<compile_context>
chip_gen: v7x
topology: tpu7x:2x2x1
jax: 0.10.0
libtpu: 0.0.40
codegen_flags: <defaults>
</compile_context>

<pallas_src>
import math
import numpy as np
import jax
import jax.numpy as jnp
from jax.experimental import pallas as pl
from jax.experimental.pallas import tpu as pltpu  # noqa: F401  (kept for TPU-specific tuning hooks)

# ---- config (small, consistent with the module) ----
B = 2            # batch
T = 8            # sequence length (context_length)
C = 32           # emb_dim
H = 4            # n_heads
D = C // H       # head size
HIDDEN = 4 * C   # FFN hidden
BT = B * T       # flattened rows
HB = H * B       # attention batch (head-major)
EPS = 1e-5       # nn.LayerNorm default eps
NEG_INF = -1e30  # finite "masked" bias (safe even if a row were fully masked)


def transformer_block_kernel(
    x_ref,
    ln1_g_ref, ln1_b_ref,
    wqkv_ref, bqkv_ref,
    wo_ref, bo_ref,
    ln2_g_ref, ln2_b_ref,
    w1_ref, b1_ref, w2_ref, b2_ref,
    out_ref,
):
    x = x_ref[...]  # (BT, C)

    # ---------------- LayerNorm 1 ----------------
    mu = jnp.mean(x, axis=-1, keepdims=True)
    var = jnp.mean((x - mu) ** 2, axis=-1, keepdims=True)          # biased, as nn.LayerNorm
    h = (x - mu) * jax.lax.rsqrt(var + EPS) * ln1_g_ref[...] + ln1_b_ref[...]

    # ---------------- Fused QKV projection (one MXU dot) ----------------
    qkv = jnp.dot(h, wqkv_ref[...], preferred_element_type=jnp.float32) + bqkv_ref[...]  # (BT, 3C)

    def to_heads(z):
        # (BT, C) -> (HB, T, D) with batch index g = h*B + b.
        # Only sublane-aligned reshapes (16,8)->(2,8,8) and a leading-dim concat.
        return jnp.concatenate(
            [z[:, i * D:(i + 1) * D].reshape(B, T, D) for i in range(H)], axis=0)

    qh = to_heads(qkv[:, 0 * C:1 * C])   # (HB, T, D)
    kh = to_heads(qkv[:, 1 * C:2 * C])
    vh = to_heads(qkv[:, 2 * C:3 * C])

    # ---------------- Batched causal attention ----------------
    row = jax.lax.broadcasted_iota(jnp.int32, (T, T), 0)
    col = jax.lax.broadcasted_iota(jnp.int32, (T, T), 1)
    bias = jnp.where(row >= col, 0.0, NEG_INF).astype(jnp.float32)  # additive mask, built once

    scale = 1.0 / math.sqrt(D)
    s = jnp.einsum('btd,bsd->bts', qh, kh,
                   preferred_element_type=jnp.float32) * scale      # (HB, T, T)
    s = s + bias[None, :, :]

    # manual softmax: divide goes to the (otherwise idle) EUP slot
    m = jnp.max(s, axis=-1, keepdims=True)
    p = jnp.exp(s - m)
    denom = jnp.sum(p, axis=-1, keepdims=True)
    p = p * pl.reciprocal(denom, approx=True)

    yh = jnp.einsum('bts,bsd->btd', p, vh,
                    preferred_element_type=jnp.float32)             # (HB, T, D)

    def from_heads(z):
        # (HB, T, D) -> (BT, C); inverse of to_heads (same g = h*B + b ordering).
        return jnp.concatenate(
            [z[i * B:(i + 1) * B].reshape(BT, D) for i in range(H)], axis=-1)

    y = from_heads(yh)                                              # (BT, C)

    attn_out = jnp.dot(y, wo_ref[...], preferred_element_type=jnp.float32) + bo_ref[...]

    # residual 1 (dropout = identity in eval mode)
    x1 = x + attn_out

    # ---------------- LayerNorm 2 ----------------
    mu2 = jnp.mean(x1, axis=-1, keepdims=True)
    var2 = jnp.mean((x1 - mu2) ** 2, axis=-1, keepdims=True)
    h2 = (x1 - mu2) * jax.lax.rsqrt(var2 + EPS) * ln2_g_ref[...] + ln2_b_ref[...]

    # ---------------- FeedForward: Linear -> GELU(tanh) -> Linear ----------------
    ff = jnp.dot(h2, w1_ref[...], preferred_element_type=jnp.float32) + b1_ref[...]
    ff = jax.nn.gelu(ff, approximate=True)  # matches nn.GELU(approximate='tanh')
    ff = jnp.dot(ff, w2_ref[...], preferred_element_type=jnp.float32) + b2_ref[...]

    # residual 2 — single whole-block store (grid removed, so one 2 KiB write total)
    out_ref[...] = (x1 + ff).astype(out_ref.dtype)


def transformer_block(x, params):
    """x: (B, T, C) float32. Returns (B, T, C)."""
    (ln1_g, ln1_b, wq, bq, wk, bk, wv, bv, wo, bo,
     ln2_g, ln2_b, w1, b1, w2, b2) = params

    # Fuse QKV weights/biases wrapper-side (one-time packing).
    wqkv = jnp.concatenate([wq, wk, wv], axis=1)   # (C, 3C)
    bqkv = jnp.concatenate([bq, bk, bv], axis=1)   # (1, 3C)

    x2d = x.reshape(BT, C)
    packed = (ln1_g, ln1_b, wqkv, bqkv, wo, bo, ln2_g, ln2_b, w1, b1, w2, b2)

    flops = (2 * BT * C * (3 * C)          # fused QKV projection
             + 2 * HB * T * T * D * 2      # scores + attention*V
             + 2 * BT * C * C              # output projection
             + 2 * BT * C * HIDDEN * 2)    # FFN up + down
    transcendentals = HB * T * T + BT * HIDDEN + 2 * BT
    bytes_accessed = 4 * (x2d.size + sum(int(np.prod(p.shape)) for p in packed) + BT * C)

    out2d = pl.pallas_call(
        transformer_block_kernel,
        out_shape=jax.ShapeDtypeStruct((BT, C), jnp.float32),
        cost_estimate=pl.CostEstimate(
            flops=flops,
            transcendentals=transcendentals,
            bytes_accessed=bytes_accessed),
    )(x2d, *packed)
    return out2d.reshape(B, T, C)


def reference_block(x, params):
    """Pure-JAX reference for verification (exact softmax divide)."""
    (ln1_g, ln1_b, wq, bq, wk, bk, wv, bv, wo, bo,
     ln2_g, ln2_b, w1, b1, w2, b2) = params

    def ln(z, g, b):
        mu = jnp.mean(z, axis=-1, keepdims=True)
        var = jnp.mean((z - mu) ** 2, axis=-1, keepdims=True)
        return (z - mu) / jnp.sqrt(var + EPS) * g + b

    h = ln(x, ln1_g[0], ln1_b[0])
    q = h @ wq + bq[0]
    k = h @ wk + bk[0]
    v = h @ wv + bv[0]
    q = q.reshape(B, T, H, D).transpose(0, 2, 1, 3)
    k = k.reshape(B, T, H, D).transpose(0, 2, 1, 3)
    v = v.reshape(B, T, H, D).transpose(0, 2, 1, 3)
    att = (q @ jnp.swapaxes(k, -2, -1)) / math.sqrt(D)
    mask = jnp.triu(jnp.ones((T, T), bool), k=1)
    att = jnp.where(mask, -jnp.inf, att)
    att = jax.nn.softmax(att, axis=-1)
    y = (att @ v).transpose(0, 2, 1, 3).reshape(B, T, C)
    x1 = x + (y @ wo + bo[0])
    h2 = ln(x1, ln2_g[0], ln2_b[0])
    ff = jax.nn.gelu(h2 @ w1 + b1[0], approximate=True) @ w2 + b2[0]
    return x1 + ff


def init_params(key):
    ks = jax.random.split(key, 12)
    s_cc = 1.0 / math.sqrt(C)
    s_ch = 1.0 / math.sqrt(C)
    s_hc = 1.0 / math.sqrt(HIDDEN)
    params = (
        jnp.ones((1, C), jnp.float32),                                        # ln1 gamma
        jnp.zeros((1, C), jnp.float32),                                       # ln1 beta
        jax.random.uniform(ks[0], (C, C), jnp.float32, -s_cc, s_cc),          # Wq
        jax.random.uniform(ks[1], (1, C), jnp.float32, -s_cc, s_cc),          # bq
        jax.random.uniform(ks[2], (C, C), jnp.float32, -s_cc, s_cc),          # Wk
        jax.random.uniform(ks[3], (1, C), jnp.float32, -s_cc, s_cc),          # bk
        jax.random.uniform(ks[4], (C, C), jnp.float32, -s_cc, s_cc),          # Wv
        jax.random.uniform(ks[5], (1, C), jnp.float32, -s_cc, s_cc),          # bv
        jax.random.uniform(ks[6], (C, C), jnp.float32, -s_cc, s_cc),          # Wo
        jax.random.uniform(ks[7], (1, C), jnp.float32, -s_cc, s_cc),          # bo
        jnp.ones((1, C), jnp.float32),                                        # ln2 gamma
        jnp.zeros((1, C), jnp.float32),                                       # ln2 beta
        jax.random.uniform(ks[8], (C, HIDDEN), jnp.float32, -s_ch, s_ch),     # W1
        jax.random.uniform(ks[9], (1, HIDDEN), jnp.float32, -s_ch, s_ch),     # b1
        jax.random.uniform(ks[10], (HIDDEN, C), jnp.float32, -s_hc, s_hc),    # W2
        jax.random.uniform(ks[11], (1, C), jnp.float32, -s_hc, s_hc),         # b2
    )
    return params


if __name__ == "__main__":
    key = jax.random.PRNGKey(0)
    kx, kp = jax.random.split(key)
    x = jax.random.normal(kx, (B, T, C), jnp.float32)
    params = init_params(kp)

    out = transformer_block(x, params)
    out = jax.block_until_ready(out)

    ref = reference_block(x, params)
    # Tolerance accounts for the EUP approximate reciprocal used in the in-kernel softmax.
    np.testing.assert_allclose(np.asarray(out), np.asarray(ref), rtol=2e-3, atol=2e-3)

    print("KERNEL_OK")
</pallas_src>

<mosaic_0001>
module attributes {stable_mosaic.version = 11 : i64} {
  func.func @transformer_block_kernel(%arg0: memref<16x32xf32, #tpu.memory_space<vmem>>, %arg1: memref<1x32xf32, #tpu.memory_space<vmem>>, %arg2: memref<1x32xf32, #tpu.memory_space<vmem>>, %arg3: memref<32x96xf32, #tpu.memory_space<vmem>>, %arg4: memref<1x96xf32, #tpu.memory_space<vmem>>, %arg5: memref<32x32xf32, #tpu.memory_space<vmem>>, %arg6: memref<1x32xf32, #tpu.memory_space<vmem>>, %arg7: memref<1x32xf32, #tpu.memory_space<vmem>>, %arg8: memref<1x32xf32, #tpu.memory_space<vmem>>, %arg9: memref<32x128xf32, #tpu.memory_space<vmem>>, %arg10: memref<1x128xf32, #tpu.memory_space<vmem>>, %arg11: memref<128x32xf32, #tpu.memory_space<vmem>>, %arg12: memref<1x32xf32, #tpu.memory_space<vmem>>, %arg13: memref<16x32xf32, #tpu.memory_space<vmem>>) attributes {dimension_semantics = [], scalar_prefetch = 0 : i64, scratch_operands = 0 : i64, tpu.core_type = #tpu.core_type<tc>} {
    %c0 = arith.constant 0 : index
    %c0_0 = arith.constant 0 : index
    %0 = vector.load %arg0[%c0, %c0_0] : memref<16x32xf32, #tpu.memory_space<vmem>>, vector<16x32xf32>
    %cst = arith.constant dense<0.000000e+00> : vector<16xf32>
    %1 = vector.multi_reduction <add>, %0, %cst [1] : vector<16x32xf32> to vector<16xf32>
    %2 = vector.shape_cast %1 : vector<16xf32> to vector<16x1xf32>
    %cst_1 = arith.constant 3.200000e+01 : f32
    %3 = vector.broadcast %cst_1 : f32 to vector<16x1xf32>
    %4 = arith.divf %2, %3 : vector<16x1xf32>
    %5 = vector.broadcast %4 : vector<16x1xf32> to vector<16x32xf32>
    %6 = arith.subf %0, %5 : vector<16x32xf32>
    %7 = arith.mulf %6, %6 : vector<16x32xf32>
    %cst_2 = arith.constant dense<0.000000e+00> : vector<16xf32>
    %8 = vector.multi_reduction <add>, %7, %cst_2 [1] : vector<16x32xf32> to vector<16xf32>
    %9 = vector.shape_cast %8 : vector<16xf32> to vector<16x1xf32>
    %cst_3 = arith.constant 3.200000e+01 : f32
    %10 = vector.broadcast %cst_3 : f32 to vector<16x1xf32>
    %11 = arith.divf %9, %10 : vector<16x1xf32>
    %12 = vector.broadcast %4 : vector<16x1xf32> to vector<16x32xf32>
    %13 = arith.subf %0, %12 : vector<16x32xf32>
    %cst_4 = arith.constant 9.99999974E-6 : f32
    %14 = vector.broadcast %cst_4 : f32 to vector<16x1xf32>
    %15 = arith.addf %11, %14 : vector<16x1xf32>
    %16 = math.rsqrt %15 : vector<16x1xf32>
    %17 = vector.broadcast %16 : vector<16x1xf32> to vector<16x32xf32>
    %18 = arith.mulf %13, %17 : vector<16x32xf32>
    %c0_5 = arith.constant 0 : index
    %c0_6 = arith.constant 0 : index
    %19 = vector.load %arg1[%c0_5, %c0_6] : memref<1x32xf32, #tpu.memory_space<vmem>>, vector<1x32xf32>
    %20 = vector.broadcast %19 : vector<1x32xf32> to vector<16x32xf32>
    %21 = arith.mulf %18, %20 : vector<16x32xf32>
    %c0_7 = arith.constant 0 : index
    %c0_8 = arith.constant 0 : index
    %22 = vector.load %arg2[%c0_7, %c0_8] : memref<1x32xf32, #tpu.memory_space<vmem>>, vector<1x32xf32>
    %23 = vector.broadcast %22 : vector<1x32xf32> to vector<16x32xf32>
    %24 = arith.addf %21, %23 : vector<16x32xf32>
    %c0_9 = arith.constant 0 : index
    %c0_10 = arith.constant 0 : index
    %25 = vector.load %arg3[%c0_9, %c0_10] : memref<32x96xf32, #tpu.memory_space<vmem>>, vector<32x96xf32>
    %cst_11 = arith.constant dense<0.000000e+00> : vector<16x96xf32>
    %26 = tpu.matmul %24, %25, %cst_11 {dimension_numbers = #tpu.dot_dimension_numbers<[1], [0], [0], [1], [0, 0, 1, 1], [], []>} : vector<16x32xf32>, vector<32x96xf32>, vector<16x96xf32> -> vector<16x96xf32>
    %c0_12 = arith.constant 0 : index
    %c0_13 = arith.constant 0 : index
    %27 = vector.load %arg4[%c0_12, %c0_13] : memref<1x96xf32, #tpu.memory_space<vmem>>, vector<1x96xf32>
    %28 = vector.broadcast %27 : vector<1x96xf32> to vector<16x96xf32>
    %29 = arith.addf %26, %28 : vector<16x96xf32>
    %30 = vector.extract_strided_slice %29 {offsets = [0, 0], sizes = [16, 32], strides = [1, 1]} : vector<16x96xf32> to vector<16x32xf32>
    %31 = vector.extract_strided_slice %30 {offsets = [0, 0], sizes = [16, 8], strides = [1, 1]} : vector<16x32xf32> to vector<16x8xf32>
    %32 = vector.shape_cast %31 : vector<16x8xf32> to vector<2x8x8xf32>
    %33 = vector.extract_strided_slice %30 {offsets = [0, 8], sizes = [16, 8], strides = [1, 1]} : vector<16x32xf32> to vector<16x8xf32>
    %34 = vector.shape_cast %33 : vector<16x8xf32> to vector<2x8x8xf32>
    %35 = vector.extract_strided_slice %30 {offsets = [0, 16], sizes = [16, 8], strides = [1, 1]} : vector<16x32xf32> to vector<16x8xf32>
    %36 = vector.shape_cast %35 : vector<16x8xf32> to vector<2x8x8xf32>
    %37 = vector.extract_strided_slice %30 {offsets = [0, 24], sizes = [16, 8], strides = [1, 1]} : vector<16x32xf32> to vector<16x8xf32>
    %38 = vector.shape_cast %37 : vector<16x8xf32> to vector<2x8x8xf32>
    %39 = tpu.concatenate %32, %34, %36, %38 in 0 : vector<2x8x8xf32>, vector<2x8x8xf32>, vector<2x8x8xf32>, vector<2x8x8xf32> -> vector<8x8x8xf32>
    %40 = vector.extract_strided_slice %29 {offsets = [0, 32], sizes = [16, 32], strides = [1, 1]} : vector<16x96xf32> to vector<16x32xf32>
    %41 = vector.extract_strided_slice %40 {offsets = [0, 0], sizes = [16, 8], strides = [1, 1]} : vector<16x32xf32> to vector<16x8xf32>
    %42 = vector.shape_cast %41 : vector<16x8xf32> to vector<2x8x8xf32>
    %43 = vector.extract_strided_slice %40 {offsets = [0, 8], sizes = [16, 8], strides = [1, 1]} : vector<16x32xf32> to vector<16x8xf32>
    %44 = vector.shape_cast %43 : vector<16x8xf32> to vector<2x8x8xf32>
    %45 = vector.extract_strided_slice %40 {offsets = [0, 16], sizes = [16, 8], strides = [1, 1]} : vector<16x32xf32> to vector<16x8xf32>
    %46 = vector.shape_cast %45 : vector<16x8xf32> to vector<2x8x8xf32>
    %47 = vector.extract_strided_slice %40 {offsets = [0, 24], sizes = [16, 8], strides = [1, 1]} : vector<16x32xf32> to vector<16x8xf32>
    %48 = vector.shape_cast %47 : vector<16x8xf32> to vector<2x8x8xf32>
    %49 = tpu.concatenate %42, %44, %46, %48 in 0 : vector<2x8x8xf32>, vector<2x8x8xf32>, vector<2x8x8xf32>, vector<2x8x8xf32> -> vector<8x8x8xf32>
    %50 = vector.extract_strided_slice %29 {offsets = [0, 64], sizes = [16, 32], strides = [1, 1]} : vector<16x96xf32> to vector<16x32xf32>
    %51 = vector.extract_strided_slice %50 {offsets = [0, 0], sizes = [16, 8], strides = [1, 1]} : vector<16x32xf32> to vector<16x8xf32>
    %52 = vector.shape_cast %51 : vector<16x8xf32> to vector<2x8x8xf32>
    %53 = vector.extract_strided_slice %50 {offsets = [0, 8], sizes = [16, 8], strides = [1, 1]} : vector<16x32xf32> to vector<16x8xf32>
    %54 = vector.shape_cast %53 : vector<16x8xf32> to vector<2x8x8xf32>
    %55 = vector.extract_strided_slice %50 {offsets = [0, 16], sizes = [16, 8], strides = [1, 1]} : vector<16x32xf32> to vector<16x8xf32>
    %56 = vector.shape_cast %55 : vector<16x8xf32> to vector<2x8x8xf32>
    %57 = vector.extract_strided_slice %50 {offsets = [0, 24], sizes = [16, 8], strides = [1, 1]} : vector<16x32xf32> to vector<16x8xf32>
    %58 = vector.shape_cast %57 : vector<16x8xf32> to vector<2x8x8xf32>
    %59 = tpu.concatenate %52, %54, %56, %58 in 0 : vector<2x8x8xf32>, vector<2x8x8xf32>, vector<2x8x8xf32>, vector<2x8x8xf32> -> vector<8x8x8xf32>
    %60 = tpu.iota {dimensions = array<i32: 0>} : vector<8x8xi32>
    %61 = tpu.iota {dimensions = array<i32: 1>} : vector<8x8xi32>
    %62 = arith.cmpi sge, %60, %61 : vector<8x8xi32>
    %cst_14 = arith.constant 0.000000e+00 : f32
    %cst_15 = arith.constant -1.000000e+30 : f32
    %63 = vector.broadcast %cst_14 : f32 to vector<8x8xf32>
    %64 = vector.broadcast %cst_15 : f32 to vector<8x8xf32>
    %65 = arith.select %62, %63, %64 : vector<8x8xi1>, vector<8x8xf32>
    "tpu.trace_start"() <{level = 10 : i32, message = "btd,bsd->bts"}> : () -> ()
    %cst_16 = arith.constant dense<0.000000e+00> : vector<8x8x8xf32>
    %66 = tpu.matmul %39, %49, %cst_16 {dimension_numbers = #tpu.dot_dimension_numbers<[2], [2], [1], [1], [0, 0, 0, 1, 1, 1], [0], [0]>} : vector<8x8x8xf32>, vector<8x8x8xf32>, vector<8x8x8xf32> -> vector<8x8x8xf32>
    "tpu.trace_stop"() : () -> ()
    %cst_17 = arith.constant 0.353553385 : f32
    %67 = vector.broadcast %cst_17 : f32 to vector<8x8x8xf32>
    %68 = arith.mulf %66, %67 : vector<8x8x8xf32>
    %69 = vector.shape_cast %65 : vector<8x8xf32> to vector<1x8x8xf32>
    %70 = vector.broadcast %69 : vector<1x8x8xf32> to vector<8x8x8xf32>
    %71 = arith.addf %68, %70 : vector<8x8x8xf32>
    %cst_18 = arith.constant dense<0xFF800000> : vector<8x8xf32>
    %72 = vector.multi_reduction <maximumf>, %71, %cst_18 [2] : vector<8x8x8xf32> to vector<8x8xf32>
    %73 = vector.shape_cast %72 : vector<8x8xf32> to vector<8x8x1xf32>
    %74 = vector.broadcast %73 : vector<8x8x1xf32> to vector<8x8x8xf32>
    %75 = arith.subf %71, %74 : vector<8x8x8xf32>
    %76 = math.exp %75 : vector<8x8x8xf32>
    %cst_19 = arith.constant dense<0.000000e+00> : vector<8x8xf32>
    %77 = vector.multi_reduction <add>, %76, %cst_19 [2] : vector<8x8x8xf32> to vector<8x8xf32>
    %78 = vector.shape_cast %77 : vector<8x8xf32> to vector<8x8x1xf32>
    %79 = tpu.reciprocal %78 {approx = true} : vector<8x8x1xf32> -> vector<8x8x1xf32>
    %80 = vector.broadcast %79 : vector<8x8x1xf32> to vector<8x8x8xf32>
    %81 = arith.mulf %76, %80 : vector<8x8x8xf32>
    "tpu.trace_start"() <{level = 10 : i32, message = "bts,bsd->btd"}> : () -> ()
    %cst_20 = arith.constant dense<0.000000e+00> : vector<8x8x8xf32>
    %82 = tpu.matmul %81, %59, %cst_20 {dimension_numbers = #tpu.dot_dimension_numbers<[2], [1], [1], [2], [0, 0, 0, 1, 1, 2], [0], [0]>} : vector<8x8x8xf32>, vector<8x8x8xf32>, vector<8x8x8xf32> -> vector<8x8x8xf32>
    "tpu.trace_stop"() : () -> ()
    %83 = vector.extract_strided_slice %82 {offsets = [0, 0, 0], sizes = [2, 8, 8], strides = [1, 1, 1]} : vector<8x8x8xf32> to vector<2x8x8xf32>
    %84 = vector.shape_cast %83 : vector<2x8x8xf32> to vector<16x8xf32>
    %85 = vector.extract_strided_slice %82 {offsets = [2, 0, 0], sizes = [2, 8, 8], strides = [1, 1, 1]} : vector<8x8x8xf32> to vector<2x8x8xf32>
    %86 = vector.shape_cast %85 : vector<2x8x8xf32> to vector<16x8xf32>
    %87 = vector.extract_strided_slice %82 {offsets = [4, 0, 0], sizes = [2, 8, 8], strides = [1, 1, 1]} : vector<8x8x8xf32> to vector<2x8x8xf32>
    %88 = vector.shape_cast %87 : vector<2x8x8xf32> to vector<16x8xf32>
    %89 = vector.extract_strided_slice %82 {offsets = [6, 0, 0], sizes = [2, 8, 8], strides = [1, 1, 1]} : vector<8x8x8xf32> to vector<2x8x8xf32>
    %90 = vector.shape_cast %89 : vector<2x8x8xf32> to vector<16x8xf32>
    %91 = tpu.concatenate %84, %86, %88, %90 in 1 : vector<16x8xf32>, vector<16x8xf32>, vector<16x8xf32>, vector<16x8xf32> -> vector<16x32xf32>
    %c0_21 = arith.constant 0 : index
    %c0_22 = arith.constant 0 : index
    %92 = vector.load %arg5[%c0_21, %c0_22] : memref<32x32xf32, #tpu.memory_space<vmem>>, vector<32x32xf32>
    %cst_23 = arith.constant dense<0.000000e+00> : vector<16x32xf32>
    %93 = tpu.matmul %91, %92, %cst_23 {dimension_numbers = #tpu.dot_dimension_numbers<[1], [0], [0], [1], [0, 0, 1, 1], [], []>} : vector<16x32xf32>, vector<32x32xf32>, vector<16x32xf32> -> vector<16x32xf32>
    %c0_24 = arith.constant 0 : index
    %c0_25 = arith.constant 0 : index
    %94 = vector.load %arg6[%c0_24, %c0_25] : memref<1x32xf32, #tpu.memory_space<vmem>>, vector<1x32xf32>
    %95 = vector.broadcast %94 : vector<1x32xf32> to vector<16x32xf32>
    %96 = arith.addf %93, %95 : vector<16x32xf32>
    %97 = arith.addf %0, %96 : vector<16x32xf32>
    %cst_26 = arith.constant dense<0.000000e+00> : vector<16xf32>
    %98 = vector.multi_reduction <add>, %97, %cst_26 [1] : vector<16x32xf32> to vector<16xf32>
    %99 = vector.shape_cast %98 : vector<16xf32> to vector<16x1xf32>
    %cst_27 = arith.constant 3.200000e+01 : f32
    %100 = vector.broadcast %cst_27 : f32 to vector<16x1xf32>
    %101 = arith.divf %99, %100 : vector<16x1xf32>
    %102 = vector.broadcast %101 : vector<16x1xf32> to vector<16x32xf32>
    %103 = arith.subf %97, %102 : vector<16x32xf32>
    %104 = arith.mulf %103, %103 : vector<16x32xf32>
    %cst_28 = arith.constant dense<0.000000e+00> : vector<16xf32>
    %105 = vector.multi_reduction <add>, %104, %cst_28 [1] : vector<16x32xf32> to vector<16xf32>
    %106 = vector.shape_cast %105 : vector<16xf32> to vector<16x1xf32>
    %cst_29 = arith.constant 3.200000e+01 : f32
    %107 = vector.broadcast %cst_29 : f32 to vector<16x1xf32>
    %108 = arith.divf %106, %107 : vector<16x1xf32>
    %109 = vector.broadcast %101 : vector<16x1xf32> to vector<16x32xf32>
    %110 = arith.subf %97, %109 : vector<16x32xf32>
    %cst_30 = arith.constant 9.99999974E-6 : f32
    %111 = vector.broadcast %cst_30 : f32 to vector<16x1xf32>
    %112 = arith.addf %108, %111 : vector<16x1xf32>
    %113 = math.rsqrt %112 : vector<16x1xf32>
    %114 = vector.broadcast %113 : vector<16x1xf32> to vector<16x32xf32>
    %115 = arith.mulf %110, %114 : vector<16x32xf32>
    %c0_31 = arith.constant 0 : index
    %c0_32 = arith.constant 0 : index
    %116 = vector.load %arg7[%c0_31, %c0_32] : memref<1x32xf32, #tpu.memory_space<vmem>>, vector<1x32xf32>
    %117 = vector.broadcast %116 : vector<1x32xf32> to vector<16x32xf32>
    %118 = arith.mulf %115, %117 : vector<16x32xf32>
    %c0_33 = arith.constant 0 : index
    %c0_34 = arith.constant 0 : index
    %119 = vector.load %arg8[%c0_33, %c0_34] : memref<1x32xf32, #tpu.memory_space<vmem>>, vector<1x32xf32>
    %120 = vector.broadcast %119 : vector<1x32xf32> to vector<16x32xf32>
    %121 = arith.addf %118, %120 : vector<16x32xf32>
    %c0_35 = arith.constant 0 : index
    %c0_36 = arith.constant 0 : index
    %122 = vector.load %arg9[%c0_35, %c0_36] : memref<32x128xf32, #tpu.memory_space<vmem>>, vector<32x128xf32>
    %cst_37 = arith.constant dense<0.000000e+00> : vector<16x128xf32>
    %123 = tpu.matmul %121, %122, %cst_37 {dimension_numbers = #tpu.dot_dimension_numbers<[1], [0], [0], [1], [0, 0, 1, 1], [], []>} : vector<16x32xf32>, vector<32x128xf32>, vector<16x128xf32> -> vector<16x128xf32>
    %c0_38 = arith.constant 0 : index
    %c0_39 = arith.constant 0 : index
    %124 = vector.load %arg10[%c0_38, %c0_39] : memref<1x128xf32, #tpu.memory_space<vmem>>, vector<1x128xf32>
    %125 = vector.broadcast %124 : vector<1x128xf32> to vector<16x128xf32>
    %126 = arith.addf %123, %125 : vector<16x128xf32>
    %127 = arith.mulf %126, %126 : vector<16x128xf32>
    %128 = arith.mulf %126, %127 : vector<16x128xf32>
    %cst_40 = arith.constant 4.471500e-02 : f32
    %129 = vector.broadcast %cst_40 : f32 to vector<16x128xf32>
    %130 = arith.mulf %129, %128 : vector<16x128xf32>
    %131 = arith.addf %126, %130 : vector<16x128xf32>
    %cst_41 = arith.constant 0.797884583 : f32
    %132 = vector.broadcast %cst_41 : f32 to vector<16x128xf32>
    %133 = arith.mulf %132, %131 : vector<16x128xf32>
    %134 = math.tanh %133 : vector<16x128xf32>
    %cst_42 = arith.constant 1.000000e+00 : f32
    %135 = vector.broadcast %cst_42 : f32 to vector<16x128xf32>
    %136 = arith.addf %135, %134 : vector<16x128xf32>
    %cst_43 = arith.constant 5.000000e-01 : f32
    %137 = vector.broadcast %cst_43 : f32 to vector<16x128xf32>
    %138 = arith.mulf %137, %136 : vector<16x128xf32>
    %139 = arith.mulf %126, %138 : vector<16x128xf32>
    %c0_44 = arith.constant 0 : index
    %c0_45 = arith.constant 0 : index
    %140 = vector.load %arg11[%c0_44, %c0_45] : memref<128x32xf32, #tpu.memory_space<vmem>>, vector<128x32xf32>
    %cst_46 = arith.constant dense<0.000000e+00> : vector<16x32xf32>
    %141 = tpu.matmul %139, %140, %cst_46 {dimension_numbers = #tpu.dot_dimension_numbers<[1], [0], [0], [1], [0, 0, 1, 1], [], []>} : vector<16x128xf32>, vector<128x32xf32>, vector<16x32xf32> -> vector<16x32xf32>
    %c0_47 = arith.constant 0 : index
    %c0_48 = arith.constant 0 : index
    %142 = vector.load %arg12[%c0_47, %c0_48] : memref<1x32xf32, #tpu.memory_space<vmem>>, vector<1x32xf32>
    %143 = vector.broadcast %142 : vector<1x32xf32> to vector<16x32xf32>
    %144 = arith.addf %141, %143 : vector<16x32xf32>
    %145 = arith.addf %97, %144 : vector<16x32xf32>
    %c0_49 = arith.constant 0 : index
    %c0_50 = arith.constant 0 : index
    %146 = vector.load %arg13[%c0_49, %c0_50] : memref<16x32xf32, #tpu.memory_space<vmem>>, vector<16x32xf32>
    tpu.vector_store %arg13[%c0_49, %c0_50], %145 {strides = array<i32>} : memref<16x32xf32, #tpu.memory_space<vmem>>, vector<16x32xf32>,
    return
  }
}

</mosaic_0001>

<llo_original>
// kernel: tpu_custom_call.1
$region0: #{tpu_custom_call.1}
  #allocation0 [shape = 'u32[]', space=smem, size = 0x4, offset = 0x4, fixed_abs, tag = 'smem constant byte address 0x4 - core index']
  #allocation1 [shape = 'u32[144,128]{1,0:T(1,128)}', space=vmem, size = 0x12000, scoped, tag = 'internal scratch']
  %s0 = inlined_call_operand.vmem [shape: f32[16,32], index: 0, kind: input, shape index: {}]
  %s1 = inlined_call_operand.vmem [shape: f32[1,32], index: 1, kind: input, shape index: {}]
  %s2 = inlined_call_operand.vmem [shape: f32[1,32], index: 2, kind: input, shape index: {}]
  %s3 = inlined_call_operand.vmem [shape: f32[32,96], index: 3, kind: input, shape index: {}]
  %s4 = inlined_call_operand.vmem [shape: f32[1,96], index: 4, kind: input, shape index: {}]
  %s5 = inlined_call_operand.vmem [shape: f32[32,32], index: 5, kind: input, shape index: {}]
  %s6 = inlined_call_operand.vmem [shape: f32[1,32], index: 6, kind: input, shape index: {}]
  %s7 = inlined_call_operand.vmem [shape: f32[1,32], index: 7, kind: input, shape index: {}]
  %s8 = inlined_call_operand.vmem [shape: f32[1,32], index: 8, kind: input, shape index: {}]
  %s9 = inlined_call_operand.vmem [shape: f32[32,128], index: 9, kind: input, shape index: {}]
  %s10 = inlined_call_operand.vmem [shape: f32[1,128], index: 10, kind: input, shape index: {}]
  %s11 = inlined_call_operand.vmem [shape: f32[128,32], index: 11, kind: input, shape index: {}]
  %s12 = inlined_call_operand.vmem [shape: f32[1,32], index: 12, kind: input, shape index: {}]
  %s13 = inlined_call_operand.hbm [shape: f32[16,32], index: 13, kind: output, shape index: {}]
  %s14 = sld [smem:[#allocation0]]
  $region62: #{tpu_custom_call.1} parent=0
    _
  %s16 = ssub.s32 1, %s14
  %s17 = scalar_select 0, %s16, %s14
  $region1: #{tpu_custom_call.1} parent=0
    #allocation2 [shape = 'u8[8192]{0}', space=vmem, size = 0x2000, scoped, tag = 'output window, operand 0, single buffered']
    #allocation3 [shape = 's32[1]{0}', space=sflag, size = 0x4, scoped, tag = 'scoped memory for tpu_custom_call.1']
    %18 = vsyncpa [#allocation3], 0
    // Predicated region
    $region2: #{tpu_custom_call.1} parent=1 // pred_check
      _
    $region3: #{tpu_custom_call.1} parent=1 // pred_check_branch
      %20 = sbr.rel (0) target = $region5
    $region4: #{tpu_custom_call.1} parent=1 // pred_region
      _
    $region5: #{tpu_custom_call.1} parent=1 // pred_fallthru
      _
    // Predicated region
    $region6: #{tpu_custom_call.1} parent=1 // pred_check
      _
    $region7: #{tpu_custom_call.1} parent=1 // pred_check_branch
      %22 = sbr.rel (0) target = $region9
    $region8: #{tpu_custom_call.1} parent=1 // pred_region
      _
    $region9: #{tpu_custom_call.1} parent=1 // pred_fallthru
      _
    // Predicated region
    $region10: #{tpu_custom_call.1} parent=1 // pred_check
      _
    $region11: #{tpu_custom_call.1} parent=1 // pred_check_branch
      %24 = sbr.rel (0) target = $region13
    $region12: #{tpu_custom_call.1} parent=1 // pred_region
      _
    $region13: #{tpu_custom_call.1} parent=1 // pred_fallthru
      _
    // Predicated region
    $region14: #{tpu_custom_call.1} parent=1 // pred_check
      _
    $region15: #{tpu_custom_call.1} parent=1 // pred_check_branch
      %26 = sbr.rel (0) target = $region17
    $region16: #{tpu_custom_call.1} parent=1 // pred_region
      _
    $region17: #{tpu_custom_call.1} parent=1 // pred_fallthru
      _
    // Predicated region
    $region18: #{tpu_custom_call.1} parent=1 // pred_check
      _
    $region19: #{tpu_custom_call.1} parent=1 // pred_check_branch
      %28 = sbr.rel (0) target = $region21
    $region20: #{tpu_custom_call.1} parent=1 // pred_region
      _
    $region21: #{tpu_custom_call.1} parent=1 // pred_fallthru
      _
    // Predicated region
    $region22: #{tpu_custom_call.1} parent=1 // pred_check
      _
    $region23: #{tpu_custom_call.1} parent=1 // pred_check_branch
      %30 = sbr.rel (0) target = $region25
    $region24: #{tpu_custom_call.1} parent=1 // pred_region
      _
    $region25: #{tpu_custom_call.1} parent=1 // pred_fallthru
      _
    // Predicated region
    $region26: #{tpu_custom_call.1} parent=1 // pred_check
      _
    $region27: #{tpu_custom_call.1} parent=1 // pred_check_branch
      %32 = sbr.rel (0) target = $region29
    $region28: #{tpu_custom_call.1} parent=1 // pred_region
      _
    $region29: #{tpu_custom_call.1} parent=1 // pred_fallthru
      _
    // Predicated region
    $region30: #{tpu_custom_call.1} parent=1 // pred_check
      _
    $region31: #{tpu_custom_call.1} parent=1 // pred_check_branch
      %34 = sbr.rel (0) target = $region33
    $region32: #{tpu_custom_call.1} parent=1 // pred_region
      _
    $region33: #{tpu_custom_call.1} parent=1 // pred_fallthru
      _
    // Predicated region
    $region34: #{tpu_custom_call.1} parent=1 // pred_check
      _
    $region35: #{tpu_custom_call.1} parent=1 // pred_check_branch
      %36 = sbr.rel (0) target = $region37
    $region36: #{tpu_custom_call.1} parent=1 // pred_region
      _
    $region37: #{tpu_custom_call.1} parent=1 // pred_fallthru
      _
    // Predicated region
    $region38: #{tpu_custom_call.1} parent=1 // pred_check
      _
    $region39: #{tpu_custom_call.1} parent=1 // pred_check_branch
      %38 = sbr.rel (0) target = $region41
    $region40: #{tpu_custom_call.1} parent=1 // pred_region
      _
    $region41: #{tpu_custom_call.1} parent=1 // pred_fallthru
      _
    // Predicated region
    $region42: #{tpu_custom_call.1} parent=1 // pred_check
      _
    $region43: #{tpu_custom_call.1} parent=1 // pred_check_branch
      %40 = sbr.rel (0) target = $region45
    $region44: #{tpu_custom_call.1} parent=1 // pred_region
      _
    $region45: #{tpu_custom_call.1} parent=1 // pred_fallthru
      _
    // Predicated region
    $region46: #{tpu_custom_call.1} parent=1 // pred_check
      _
    $region47: #{tpu_custom_call.1} parent=1 // pred_check_branch
      %42 = sbr.rel (0) target = $region49
    $region48: #{tpu_custom_call.1} parent=1 // pred_region
      _
    $region49: #{tpu_custom_call.1} parent=1 // pred_fallthru
      _
    // Predicated region
    $region50: #{tpu_custom_call.1} parent=1 // pred_check
      _
    $region51: #{tpu_custom_call.1} parent=1 // pred_check_branch
      %44 = sbr.rel (0) target = $region53
    $region52: #{tpu_custom_call.1} parent=1 // pred_region
      _
    $region53: #{tpu_custom_call.1} parent=1 // pred_fallthru
      _
    %v45 = vld [vmem:[%s0] sm:$0xff]
    %v46 = vld [vmem:[%s0 + $0x8] sm:$0xff]
    %vm47 = vcmask 261120
    %v48 = vsel %vm47, %v45, 0.0
    %49 = vadd.xlane.f32.xlu0 %v48
    %v50 = vpop.xlane.xlu0 %49
    %v51 = vsel %vm47, %v46, 0.0
    %52 = vadd.xlane.f32.xlu0 %v51
    %v53 = vpop.xlane.xlu0 %52
    %v54 = vrcp.pop 32.0
    %v55 = vmul.f32 %v50, %v54
    %v56 = vmul.f32 %v53, %v54
    %v57 = vsub.f32 %v45, %v55
    %v58 = vsub.f32 %v46, %v56
    %v59 = vmul.f32 %v57, %v57
    %v60 = vmul.f32 %v58, %v58
    %v61 = vsel %vm47, %v59, 0.0
    %62 = vadd.xlane.f32.xlu0 %v61
    %v63 = vpop.xlane.xlu0 %62
    %v64 = vsel %vm47, %v60, 0.0
    %65 = vadd.xlane.f32.xlu0 %v64
    %v66 = vpop.xlane.xlu0 %65
    %v67 = vmul.f32 %v63, %v54
    %v68 = vmul.f32 %v66, %v54
    %v69 = vadd.f32 %v67, 1e-05
    %v70 = vadd.f32 %v68, 1e-05
    %v71 = vrsqrt.pop %v69
    %v72 = vrsqrt.pop %v70
    %v73 = vmul.f32 %v57, %v71
    %v74 = vmul.f32 %v58, %v72
    %v75 = vld [vmem:[%s1] sm:$0x1]
    %v77 = vlaneseq
    %v78 = vshrl.u32 %v77, 7
    %v79 = vsub.s32 0, %v78
    %v80 = vrot.slane %v75, %v79
    %v82 = vmul.f32 %v73, %v80
    %v83 = vmul.f32 %v74, %v80
    %v84 = vld [vmem:[%s2] sm:$0x1]
    %v86 = vlaneseq
    %v87 = vshrl.u32 %v86, 7
    %v88 = vsub.s32 0, %v87
    %v89 = vrot.slane %v84, %v88
    %v91 = vadd.f32 %v82, %v89
    %v92 = vadd.f32 %v83, %v89
    %v93 = vld [vmem:[%s3] sm:$0xff]
    %v94 = vld [vmem:[%s3 + $0x8] sm:$0xff]
    %v95 = vld [vmem:[%s3 + $0x10] sm:$0xff]
    %v96 = vld [vmem:[%s3 + $0x18] sm:$0xff]
    %v97 = vld [vmem:[%s4] sm:$0x1]
    %v99 = vlaneseq
    %v100 = vshrl.u32 %v99, 7
    %v101 = vsub.s32 0, %v100
    %v102 = vrot.slane %v97, %v101
    %v105 = vsel %vm47, %v91, 0
    %v108 = vsel %vm47, %v92, 0
    %110 = vmatprep.subr.mxu0 0.0
    %111 = vmatpush1.msra.mxu0 %v93
    %112 = vmatprep.subr.mxu0 0.0
    %113 = vmatpush1.msra.mxu0 %v94
    %114 = vmatprep.subr.mxu0 0.0
    %115 = vmatpush1.msra.mxu0 %v95
    %116 = vmatprep.subr.mxu0 0.0
    %117 = vmatpush1.msra.mxu0 %v96
    %118 = vmatprep.subr.mxu0 0.0
    %119 = vmatpush1.msra.mxu0 0.0
    %120 = vmatprep.subr.mxu0 0.0
    %121 = vmatpush1.msra.mxu0 0.0
    %122 = vmatprep.subr.mxu0 0.0
    %123 = vmatpush1.msra.mxu0 0.0
    %124 = vmatprep.subr.mxu0 0.0
    %125 = vmatpush1.msra.mxu0 0.0
    %126 = vmatprep.subr.mxu0 0.0
    %127 = vmatpush1.msra.mxu0 0.0
    %128 = vmatprep.subr.mxu0 0.0
    %129 = vmatpush1.msra.mxu0 0.0
    %130 = vmatprep.subr.mxu0 0.0
    %131 = vmatpush1.msra.mxu0 0.0
    %132 = vmatprep.subr.mxu0 0.0
    %133 = vmatpush1.msra.mxu0 0.0
    %134 = vmatprep.subr.mxu0 0.0
    %135 = vmatpush1.msra.mxu0 0.0
    %136 = vmatprep.subr.mxu0 0.0
    %137 = vmatpush1.msra.mxu0 0.0
    %138 = vmatprep.subr.mxu0 0.0
    %139 = vmatpush1.msra.mxu0 0.0
    %140 = vmatprep.subr.mxu0 0.0
    %141 = vmatpush1.msra.mxu0 0.0
    %142 = vmatprep.subr.mxu0 0.0
    %143 = vmatpush1.msra.mxu0 0.0
    %144 = vmatprep.subr.mxu0 0.0
    %145 = vmatpush1.msra.mxu0 0.0
    %146 = vmatprep.subr.mxu0 0.0
    %147 = vmatpush1.msra.mxu0 0.0
    %148 = vmatprep.subr.mxu0 0.0
    %149 = vmatpush1.msra.mxu0 0.0
    %150 = vmatprep.subr.mxu0 0.0
    %151 = vmatpush1.msra.mxu0 0.0
    %152 = vmatprep.subr.mxu0 0.0
    %153 = vmatpush1.msra.mxu0 0.0
    %154 = vmatprep.subr.mxu0 0.0
    %155 = vmatpush1.msra.mxu0 0.0
    %156 = vmatprep.subr.mxu0 0.0
    %157 = vmatpush1.msra.mxu0 0.0
    %158 = vmatprep.subr.mxu0 0.0
    %159 = vmatpush1.msra.mxu0 0.0
    %160 = vmatprep.subr.mxu0 0.0
    %161 = vmatpush1.msra.mxu0 0.0
    %162 = vmatprep.subr.mxu0 0.0
    %163 = vmatpush1.msra.mxu0 0.0
    %164 = vmatprep.subr.mxu0 0.0
    %165 = vmatpush1.msra.mxu0 0.0
    %166 = vmatprep.subr.mxu0 0.0
    %167 = vmatpush1.msra.mxu0 0.0
    %168 = vmatprep.subr.mxu0 0.0
    %169 = vmatpush1.msra.mxu0 0.0
    %170 = vmatprep.subr.mxu0 0.0
    %171 = vmatpush1.msra.mxu0 0.0
    %172 = vmatprep.subr.mxu0 0.0
    %173 = vmatpush1.msra.mxu0 0.0
    %174 = vmatprep.mubr.f32.mxu0 0.0
    %175 = vmatmul.mubr.f32.gmra.mrb[0].mxu0 %v105
    %v176 = vpop.f32.mrb[0].mxu0
    %v177 = vadd.f32 %v102, %v176
    %v178 = vpop.f32.mrb[0].mxu0
    %179 = vmatprep.mubr.f32.mxu0 0.0
    %180 = vmatmul.mubr.f32.gmra.mrb[0].mxu0 %v108
    %v181 = vpop.f32.mrb[0].mxu0
    %v182 = vadd.f32 %v102, %v181
    %v183 = vpop.f32.mrb[0].mxu0
    %184 = vdwg.mxu0
    %187 = vrot.lane.b32.xlu0 %v177, 120
    %v188 = vpop.permute.xlu0 %187
    %189 = vrot.lane.b32.xlu0 %v182, 120
    %v190 = vpop.permute.xlu0 %189
    %191 = vrot.lane.b32.xlu0 %v177, 112
    %v192 = vpop.permute.xlu0 %191
    %193 = vrot.lane.b32.xlu0 %v182, 112
    %v194 = vpop.permute.xlu0 %193
    %195 = vrot.lane.b32.xlu0 %v177, 104
    %v196 = vpop.permute.xlu0 %195
    %197 = vrot.lane.b32.xlu0 %v182, 104
    %v198 = vpop.permute.xlu0 %197
    %v199 = vlaneseq
    %v200 = vshrl.u32 %v199, 7
    %v201 = vlaneseq
    %v202 = vand.u32 %v201, 127
    %vm203 = vcmp.ge.s32.totalorder %v200, %v202
    %v204 = vsel %vm203, 0.0, -1e+30
    %205 = vrot.lane.b32.xlu0 %v177, 96
    %v206 = vpop.permute.xlu0 %205
    %vm207 = vcmask 64512
    %v208 = vsel %vm207, %v177, 0
    %v210 = vsel %vm207, %v206, 0
    %212 = vmatprep.subr.mxu0 0.0
    %213 = vmatpush1.xpose.msra.mxu0 %v210
    %214 = vmatprep.subr.mxu0 0.0
    %215 = vmatpush1.xpose.msra.mxu0 0.0
    %216 = vmatprep.subr.mxu0 0.0
    %217 = vmatpush1.xpose.msra.mxu0 0.0
    %218 = vmatprep.subr.mxu0 0.0
    %219 = vmatpush1.xpose.msra.mxu0 0.0
    %220 = vmatprep.subr.mxu0 0.0
    %221 = vmatpush1.xpose.msra.mxu0 0.0
    %222 = vmatprep.subr.mxu0 0.0
    %223 = vmatpush1.xpose.msra.mxu0 0.0
    %224 = vmatprep.subr.mxu0 0.0
    %225 = vmatpush1.xpose.msra.mxu0 0.0
    %226 = vmatprep.subr.mxu0 0.0
    %227 = vmatpush1.xpose.msra.mxu0 0.0
    %228 = vmatprep.subr.mxu0 0.0
    %229 = vmatpush1.xpose.msra.mxu0 0.0
    %230 = vmatprep.subr.mxu0 0.0
    %231 = vmatpush1.xpose.msra.mxu0 0.0
    %232 = vmatprep.subr.mxu0 0.0
    %233 = vmatpush1.xpose.msra.mxu0 0.0
    %234 = vmatprep.subr.mxu0 0.0
    %235 = vmatpush1.xpose.msra.mxu0 0.0
    %236 = vmatprep.subr.mxu0 0.0
    %237 = vmatpush1.xpose.msra.mxu0 0.0
    %238 = vmatprep.subr.mxu0 0.0
    %239 = vmatpush1.xpose.msra.mxu0 0.0
    %240 = vmatprep.subr.mxu0 0.0
    %241 = vmatpush1.xpose.msra.mxu0 0.0
    %242 = vmatprep.subr.mxu0 0.0
    %243 = vmatpush1.xpose.msra.mxu0 0.0
    %244 = vmatprep.subr.mxu0 0.0
    %245 = vmatpush1.xpose.msra.mxu0 0.0
    %246 = vmatprep.subr.mxu0 0.0
    %247 = vmatpush1.xpose.msra.mxu0 0.0
    %248 = vmatprep.subr.mxu0 0.0
    %249 = vmatpush1.xpose.msra.mxu0 0.0
    %250 = vmatprep.subr.mxu0 0.0
    %251 = vmatpush1.xpose.msra.mxu0 0.0
    %252 = vmatprep.subr.mxu0 0.0
    %253 = vmatpush1.xpose.msra.mxu0 0.0
    %254 = vmatprep.subr.mxu0 0.0
    %255 = vmatpush1.xpose.msra.mxu0 0.0
    %256 = vmatprep.subr.mxu0 0.0
    %257 = vmatpush1.xpose.msra.mxu0 0.0
    %258 = vmatprep.subr.mxu0 0.0
    %259 = vmatpush1.xpose.msra.mxu0 0.0
    %260 = vmatprep.subr.mxu0 0.0
    %261 = vmatpush1.xpose.msra.mxu0 0.0
    %262 = vmatprep.subr.mxu0 0.0
    %263 = vmatpush1.xpose.msra.mxu0 0.0
    %264 = vmatprep.subr.mxu0 0.0
    %265 = vmatpush1.xpose.msra.mxu0 0.0
    %266 = vmatprep.subr.mxu0 0.0
    %267 = vmatpush1.xpose.msra.mxu0 0.0
    %268 = vmatprep.subr.mxu0 0.0
    %269 = vmatpush1.xpose.msra.mxu0 0.0
    %270 = vmatprep.subr.mxu0 0.0
    %271 = vmatpush1.xpose.msra.mxu0 0.0
    %272 = vmatprep.subr.mxu0 0.0
    %273 = vmatpush1.xpose.msra.mxu0 0.0
    %274 = vmatprep.subr.mxu0 0.0
    %275 = vmatpush1.xpose.msra.mxu0 0.0
    %276 = vmatprep.mubr.f32.mxu0 0.0
    %277 = vmatmul.mubr.f32.gmra.mrb[0].mxu0 %v208
    %v278 = vpop.f32.mrb[0].mxu0
    %v279 = vadd.f32 0.0, %v278
    %v280 = vpop.f32.mrb[0].mxu0
    %281 = vdwg.mxu0
    %282 = vrot.lane.b32.xlu0 %v182, 96
    %v283 = vpop.permute.xlu0 %282
    %v284 = vsel %vm207, %v182, 0
    %v286 = vsel %vm207, %v283, 0
    %288 = vmatprep.subr.mxu0 0.0
    %289 = vmatpush1.xpose.msra.mxu0 %v286
    %290 = vmatprep.subr.mxu0 0.0
    %291 = vmatpush1.xpose.msra.mxu0 0.0
    %292 = vmatprep.subr.mxu0 0.0
    %293 = vmatpush1.xpose.msra.mxu0 0.0
    %294 = vmatprep.subr.mxu0 0.0
    %295 = vmatpush1.xpose.msra.mxu0 0.0
    %296 = vmatprep.subr.mxu0 0.0
    %297 = vmatpush1.xpose.msra.mxu0 0.0
    %298 = vmatprep.subr.mxu0 0.0
    %299 = vmatpush1.xpose.msra.mxu0 0.0
    %300 = vmatprep.subr.mxu0 0.0
    %301 = vmatpush1.xpose.msra.mxu0 0.0
    %302 = vmatprep.subr.mxu0 0.0
    %303 = vmatpush1.xpose.msra.mxu0 0.0
    %304 = vmatprep.subr.mxu0 0.0
    %305 = vmatpush1.xpose.msra.mxu0 0.0
    %306 = vmatprep.subr.mxu0 0.0
    %307 = vmatpush1.xpose.msra.mxu0 0.0
    %308 = vmatprep.subr.mxu0 0.0
    %309 = vmatpush1.xpose.msra.mxu0 0.0
    %310 = vmatprep.subr.mxu0 0.0
    %311 = vmatpush1.xpose.msra.mxu0 0.0
    %312 = vmatprep.subr.mxu0 0.0
    %313 = vmatpush1.xpose.msra.mxu0 0.0
    %314 = vmatprep.subr.mxu0 0.0
    %315 = vmatpush1.xpose.msra.mxu0 0.0
    %316 = vmatprep.subr.mxu0 0.0
    %317 = vmatpush1.xpose.msra.mxu0 0.0
    %318 = vmatprep.subr.mxu0 0.0
    %319 = vmatpush1.xpose.msra.mxu0 0.0
    %320 = vmatprep.subr.mxu0 0.0
    %321 = vmatpush1.xpose.msra.mxu0 0.0
    %322 = vmatprep.subr.mxu0 0.0
    %323 = vmatpush1.xpose.msra.mxu0 0.0
    %324 = vmatprep.subr.mxu0 0.0
    %325 = vmatpush1.xpose.msra.mxu0 0.0
    %326 = vmatprep.subr.mxu0 0.0
    %327 = vmatpush1.xpose.msra.mxu0 0.0
    %328 = vmatprep.subr.mxu0 0.0
    %329 = vmatpush1.xpose.msra.mxu0 0.0
    %330 = vmatprep.subr.mxu0 0.0
    %331 = vmatpush1.xpose.msra.mxu0 0.0
    %332 = vmatprep.subr.mxu0 0.0
    %333 = vmatpush1.xpose.msra.mxu0 0.0
    %334 = vmatprep.subr.mxu0 0.0
    %335 = vmatpush1.xpose.msra.mxu0 0.0
    %336 = vmatprep.subr.mxu0 0.0
    %337 = vmatpush1.xpose.msra.mxu0 0.0
    %338 = vmatprep.subr.mxu0 0.0
    %339 = vmatpush1.xpose.msra.mxu0 0.0
    %340 = vmatprep.subr.mxu0 0.0
    %341 = vmatpush1.xpose.msra.mxu0 0.0
    %342 = vmatprep.subr.mxu0 0.0
    %343 = vmatpush1.xpose.msra.mxu0 0.0
    %344 = vmatprep.subr.mxu0 0.0
    %345 = vmatpush1.xpose.msra.mxu0 0.0
    %346 = vmatprep.subr.mxu0 0.0
    %347 = vmatpush1.xpose.msra.mxu0 0.0
    %348 = vmatprep.subr.mxu0 0.0
    %349 = vmatpush1.xpose.msra.mxu0 0.0
    %350 = vmatprep.subr.mxu0 0.0
    %351 = vmatpush1.xpose.msra.mxu0 0.0
    %352 = vmatprep.mubr.f32.mxu0 0.0
    %353 = vmatmul.mubr.f32.gmra.mrb[0].mxu0 %v284
    %v354 = vpop.f32.mrb[0].mxu0
    %v355 = vadd.f32 0.0, %v354
    %v356 = vpop.f32.mrb[0].mxu0
    %357 = vdwg.mxu0
    %358 = vrot.lane.b32.xlu0 %v188, 96
    %v359 = vpop.permute.xlu0 %358
    %v360 = vsel %vm207, %v188, 0
    %v362 = vsel %vm207, %v359, 0
    %364 = vmatprep.subr.mxu0 0.0
    %365 = vmatpush1.xpose.msra.mxu0 %v362
    %366 = vmatprep.subr.mxu0 0.0
    %367 = vmatpush1.xpose.msra.mxu0 0.0
    %368 = vmatprep.subr.mxu0 0.0
    %369 = vmatpush1.xpose.msra.mxu0 0.0
    %370 = vmatprep.subr.mxu0 0.0
    %371 = vmatpush1.xpose.msra.mxu0 0.0
    %372 = vmatprep.subr.mxu0 0.0
    %373 = vmatpush1.xpose.msra.mxu0 0.0
    %374 = vmatprep.subr.mxu0 0.0
    %375 = vmatpush1.xpose.msra.mxu0 0.0
    %376 = vmatprep.subr.mxu0 0.0
    %377 = vmatpush1.xpose.msra.mxu0 0.0
    %378 = vmatprep.subr.mxu0 0.0
    %379 = vmatpush1.xpose.msra.mxu0 0.0
    %380 = vmatprep.subr.mxu0 0.0
    %381 = vmatpush1.xpose.msra.mxu0 0.0
    %382 = vmatprep.subr.mxu0 0.0
    %383 = vmatpush1.xpose.msra.mxu0 0.0
    %384 = vmatprep.subr.mxu0 0.0
    %385 = vmatpush1.xpose.msra.mxu0 0.0
    %386 = vmatprep.subr.mxu0 0.0
    %387 = vmatpush1.xpose.msra.mxu0 0.0
    %388 = vmatprep.subr.mxu0 0.0
    %389 = vmatpush1.xpose.msra.mxu0 0.0
    %390 = vmatprep.subr.mxu0 0.0
    %391 = vmatpush1.xpose.msra.mxu0 0.0
    %392 = vmatprep.subr.mxu0 0.0
    %393 = vmatpush1.xpose.msra.mxu0 0.0
    %394 = vmatprep.subr.mxu0 0.0
    %395 = vmatpush1.xpose.msra.mxu0 0.0
    %396 = vmatprep.subr.mxu0 0.0
    %397 = vmatpush1.xpose.msra.mxu0 0.0
    %398 = vmatprep.subr.mxu0 0.0
    %399 = vmatpush1.xpose.msra.mxu0 0.0
    %400 = vmatprep.subr.mxu0 0.0
    %401 = vmatpush1.xpose.msra.mxu0 0.0
    %402 = vmatprep.subr.mxu0 0.0
    %403 = vmatpush1.xpose.msra.mxu0 0.0
    %404 = vmatprep.subr.mxu0 0.0
    %405 = vmatpush1.xpose.msra.mxu0 0.0
    %406 = vmatprep.subr.mxu0 0.0
    %407 = vmatpush1.xpose.msra.mxu0 0.0
    %408 = vmatprep.subr.mxu0 0.0
    %409 = vmatpush1.xpose.msra.mxu0 0.0
    %410 = vmatprep.subr.mxu0 0.0
    %411 = vmatpush1.xpose.msra.mxu0 0.0
    %412 = vmatprep.subr.mxu0 0.0
    %413 = vmatpush1.xpose.msra.mxu0 0.0
    %414 = vmatprep.subr.mxu0 0.0
    %415 = vmatpush1.xpose.msra.mxu0 0.0
    %416 = vmatprep.subr.mxu0 0.0
    %417 = vmatpush1.xpose.msra.mxu0 0.0
    %418 = vmatprep.subr.mxu0 0.0
    %419 = vmatpush1.xpose.msra.mxu0 0.0
    %420 = vmatprep.subr.mxu0 0.0
    %421 = vmatpush1.xpose.msra.mxu0 0.0
    %422 = vmatprep.subr.mxu0 0.0
    %423 = vmatpush1.xpose.msra.mxu0 0.0
    %424 = vmatprep.subr.mxu0 0.0
    %425 = vmatpush1.xpose.msra.mxu0 0.0
    %426 = vmatprep.subr.mxu0 0.0
    %427 = vmatpush1.xpose.msra.mxu0 0.0
    %428 = vmatprep.mubr.f32.mxu0 0.0
    %429 = vmatmul.mubr.f32.gmra.mrb[0].mxu0 %v360
    %v430 = vpop.f32.mrb[0].mxu0
    %v431 = vadd.f32 0.0, %v430
    %v432 = vpop.f32.mrb[0].mxu0
    %433 = vdwg.mxu0
    %434 = vrot.lane.b32.xlu0 %v190, 96
    %v435 = vpop.permute.xlu0 %434
    %v436 = vsel %vm207, %v190, 0
    %v438 = vsel %vm207, %v435, 0
    %440 = vmatprep.subr.mxu0 0.0
    %441 = vmatpush1.xpose.msra.mxu0 %v438
    %442 = vmatprep.subr.mxu0 0.0
    %443 = vmatpush1.xpose.msra.mxu0 0.0
    %444 = vmatprep.subr.mxu0 0.0
    %445 = vmatpush1.xpose.msra.mxu0 0.0
    %446 = vmatprep.subr.mxu0 0.0
    %447 = vmatpush1.xpose.msra.mxu0 0.0
    %448 = vmatprep.subr.mxu0 0.0
    %449 = vmatpush1.xpose.msra.mxu0 0.0
    %450 = vmatprep.subr.mxu0 0.0
    %451 = vmatpush1.xpose.msra.mxu0 0.0
    %452 = vmatprep.subr.mxu0 0.0
    %453 = vmatpush1.xpose.msra.mxu0 0.0
    %454 = vmatprep.subr.mxu0 0.0
    %455 = vmatpush1.xpose.msra.mxu0 0.0
    %456 = vmatprep.subr.mxu0 0.0
    %457 = vmatpush1.xpose.msra.mxu0 0.0
    %458 = vmatprep.subr.mxu0 0.0
    %459 = vmatpush1.xpose.msra.mxu0 0.0
    %460 = vmatprep.subr.mxu0 0.0
    %461 = vmatpush1.xpose.msra.mxu0 0.0
    %462 = vmatprep.subr.mxu0 0.0
    %463 = vmatpush1.xpose.msra.mxu0 0.0
    %464 = vmatprep.subr.mxu0 0.0
    %465 = vmatpush1.xpose.msra.mxu0 0.0
    %466 = vmatprep.subr.mxu0 0.0
    %467 = vmatpush1.xpose.msra.mxu0 0.0
    %468 = vmatprep.subr.mxu0 0.0
    %469 = vmatpush1.xpose.msra.mxu0 0.0
    %470 = vmatprep.subr.mxu0 0.0
    %471 = vmatpush1.xpose.msra.mxu0 0.0
    %472 = vmatprep.subr.mxu0 0.0
    %473 = vmatpush1.xpose.msra.mxu0 0.0
    %474 = vmatprep.subr.mxu0 0.0
    %475 = vmatpush1.xpose.msra.mxu0 0.0
    %476 = vmatprep.subr.mxu0 0.0
    %477 = vmatpush1.xpose.msra.mxu0 0.0
    %478 = vmatprep.subr.mxu0 0.0
    %479 = vmatpush1.xpose.msra.mxu0 0.0
    %480 = vmatprep.subr.mxu0 0.0
    %481 = vmatpush1.xpose.msra.mxu0 0.0
    %482 = vmatprep.subr.mxu0 0.0
    %483 = vmatpush1.xpose.msra.mxu0 0.0
    %484 = vmatprep.subr.mxu0 0.0
    %485 = vmatpush1.xpose.msra.mxu0 0.0
    %486 = vmatprep.subr.mxu0 0.0
    %487 = vmatpush1.xpose.msra.mxu0 0.0
    %488 = vmatprep.subr.mxu0 0.0
    %489 = vmatpush1.xpose.msra.mxu0 0.0
    %490 = vmatprep.subr.mxu0 0.0
    %491 = vmatpush1.xpose.msra.mxu0 0.0
    %492 = vmatprep.subr.mxu0 0.0
    %493 = vmatpush1.xpose.msra.mxu0 0.0
    %494 = vmatprep.subr.mxu0 0.0
    %495 = vmatpush1.xpose.msra.mxu0 0.0
    %496 = vmatprep.subr.mxu0 0.0
    %497 = vmatpush1.xpose.msra.mxu0 0.0
    %498 = vmatprep.subr.mxu0 0.0
    %499 = vmatpush1.xpose.msra.mxu0 0.0
    %500 = vmatprep.subr.mxu0 0.0
    %501 = vmatpush1.xpose.msra.mxu0 0.0
    %502 = vmatprep.subr.mxu0 0.0
    %503 = vmatpush1.xpose.msra.mxu0 0.0
    %504 = vmatprep.mubr.f32.mxu0 0.0
    %505 = vmatmul.mubr.f32.gmra.mrb[0].mxu0 %v436
    %v506 = vpop.f32.mrb[0].mxu0
    %v507 = vadd.f32 0.0, %v506
    %v508 = vpop.f32.mrb[0].mxu0
    %509 = vdwg.mxu0
    %510 = vrot.lane.b32.xlu0 %v192, 96
    %v511 = vpop.permute.xlu0 %510
    %v512 = vsel %vm207, %v192, 0
    %v514 = vsel %vm207, %v511, 0
    %516 = vmatprep.subr.mxu0 0.0
    %517 = vmatpush1.xpose.msra.mxu0 %v514
    %518 = vmatprep.subr.mxu0 0.0
    %519 = vmatpush1.xpose.msra.mxu0 0.0
    %520 = vmatprep.subr.mxu0 0.0
    %521 = vmatpush1.xpose.msra.mxu0 0.0
    %522 = vmatprep.subr.mxu0 0.0
    %523 = vmatpush1.xpose.msra.mxu0 0.0
    %524 = vmatprep.subr.mxu0 0.0
    %525 = vmatpush1.xpose.msra.mxu0 0.0
    %526 = vmatprep.subr.mxu0 0.0
    %527 = vmatpush1.xpose.msra.mxu0 0.0
    %528 = vmatprep.subr.mxu0 0.0
    %529 = vmatpush1.xpose.msra.mxu0 0.0
    %530 = vmatprep.subr.mxu0 0.0
    %531 = vmatpush1.xpose.msra.mxu0 0.0
    %532 = vmatprep.subr.mxu0 0.0
    %533 = vmatpush1.xpose.msra.mxu0 0.0
    %534 = vmatprep.subr.mxu0 0.0
    %535 = vmatpush1.xpose.msra.mxu0 0.0
    %536 = vmatprep.subr.mxu0 0.0
    %537 = vmatpush1.xpose.msra.mxu0 0.0
    %538 = vmatprep.subr.mxu0 0.0
    %539 = vmatpush1.xpose.msra.mxu0 0.0
    %540 = vmatprep.subr.mxu0 0.0
    %541 = vmatpush1.xpose.msra.mxu0 0.0
    %542 = vmatprep.subr.mxu0 0.0
    %543 = vmatpush1.xpose.msra.mxu0 0.0
    %544 = vmatprep.subr.mxu0 0.0
    %545 = vmatpush1.xpose.msra.mxu0 0.0
    %546 = vmatprep.subr.mxu0 0.0
    %547 = vmatpush1.xpose.msra.mxu0 0.0
    %548 = vmatprep.subr.mxu0 0.0
    %549 = vmatpush1.xpose.msra.mxu0 0.0
    %550 = vmatprep.subr.mxu0 0.0
    %551 = vmatpush1.xpose.msra.mxu0 0.0
    %552 = vmatprep.subr.mxu0 0.0
    %553 = vmatpush1.xpose.msra.mxu0 0.0
    %554 = vmatprep.subr.mxu0 0.0
    %555 = vmatpush1.xpose.msra.mxu0 0.0
    %556 = vmatprep.subr.mxu0 0.0
    %557 = vmatpush1.xpose.msra.mxu0 0.0
    %558 = vmatprep.subr.mxu0 0.0
    %559 = vmatpush1.xpose.msra.mxu0 0.0
    %560 = vmatprep.subr.mxu0 0.0
    %561 = vmatpush1.xpose.msra.mxu0 0.0
    %562 = vmatprep.subr.mxu0 0.0
    %563 = vmatpush1.xpose.msra.mxu0 0.0
    %564 = vmatprep.subr.mxu0 0.0
    %565 = vmatpush1.xpose.msra.mxu0 0.0
    %566 = vmatprep.subr.mxu0 0.0
    %567 = vmatpush1.xpose.msra.mxu0 0.0
    %568 = vmatprep.subr.mxu0 0.0
    %569 = vmatpush1.xpose.msra.mxu0 0.0
    %570 = vmatprep.subr.mxu0 0.0
    %571 = vmatpush1.xpose.msra.mxu0 0.0
    %572 = vmatprep.subr.mxu0 0.0
    %573 = vmatpush1.xpose.msra.mxu0 0.0
    %574 = vmatprep.subr.mxu0 0.0
    %575 = vmatpush1.xpose.msra.mxu0 0.0
    %576 = vmatprep.subr.mxu0 0.0
    %577 = vmatpush1.xpose.msra.mxu0 0.0
    %578 = vmatprep.subr.mxu0 0.0
    %579 = vmatpush1.xpose.msra.mxu0 0.0
    %580 = vmatprep.mubr.f32.mxu0 0.0
    %581 = vmatmul.mubr.f32.gmra.mrb[0].mxu0 %v512
    %v582 = vpop.f32.mrb[0].mxu0
    %v583 = vadd.f32 0.0, %v582
    %v584 = vpop.f32.mrb[0].mxu0
    %585 = vdwg.mxu0
    %586 = vrot.lane.b32.xlu0 %v194, 96
    %v587 = vpop.permute.xlu0 %586
    %v588 = vsel %vm207, %v194, 0
    %v590 = vsel %vm207, %v587, 0
    %592 = vmatprep.subr.mxu0 0.0
    %593 = vmatpush1.xpose.msra.mxu0 %v590
    %594 = vmatprep.subr.mxu0 0.0
    %595 = vmatpush1.xpose.msra.mxu0 0.0
    %596 = vmatprep.subr.mxu0 0.0
    %597 = vmatpush1.xpose.msra.mxu0 0.0
    %598 = vmatprep.subr.mxu0 0.0
    %599 = vmatpush1.xpose.msra.mxu0 0.0
    %600 = vmatprep.subr.mxu0 0.0
    %601 = vmatpush1.xpose.msra.mxu0 0.0
    %602 = vmatprep.subr.mxu0 0.0
    %603 = vmatpush1.xpose.msra.mxu0 0.0
    %604 = vmatprep.subr.mxu0 0.0
    %605 = vmatpush1.xpose.msra.mxu0 0.0
    %606 = vmatprep.subr.mxu0 0.0
    %607 = vmatpush1.xpose.msra.mxu0 0.0
    %608 = vmatprep.subr.mxu0 0.0
    %609 = vmatpush1.xpose.msra.mxu0 0.0
    %610 = vmatprep.subr.mxu0 0.0
    %611 = vmatpush1.xpose.msra.mxu0 0.0
    %612 = vmatprep.subr.mxu0 0.0
    %613 = vmatpush1.xpose.msra.mxu0 0.0
    %614 = vmatprep.subr.mxu0 0.0
    %615 = vmatpush1.xpose.msra.mxu0 0.0
    %616 = vmatprep.subr.mxu0 0.0
    %617 = vmatpush1.xpose.msra.mxu0 0.0
    %618 = vmatprep.subr.mxu0 0.0
    %619 = vmatpush1.xpose.msra.mxu0 0.0
    %620 = vmatprep.subr.mxu0 0.0
    %621 = vmatpush1.xpose.msra.mxu0 0.0
    %622 = vmatprep.subr.mxu0 0.0
    %623 = vmatpush1.xpose.msra.mxu0 0.0
    %624 = vmatprep.subr.mxu0 0.0
    %625 = vmatpush1.xpose.msra.mxu0 0.0
    %626 = vmatprep.subr.mxu0 0.0
    %627 = vmatpush1.xpose.msra.mxu0 0.0
    %628 = vmatprep.subr.mxu0 0.0
    %629 = vmatpush1.xpose.msra.mxu0 0.0
    %630 = vmatprep.subr.mxu0 0.0
    %631 = vmatpush1.xpose.msra.mxu0 0.0
    %632 = vmatprep.subr.mxu0 0.0
    %633 = vmatpush1.xpose.msra.mxu0 0.0
    %634 = vmatprep.subr.mxu0 0.0
    %635 = vmatpush1.xpose.msra.mxu0 0.0
    %636 = vmatprep.subr.mxu0 0.0
    %637 = vmatpush1.xpose.msra.mxu0 0.0
    %638 = vmatprep.subr.mxu0 0.0
    %639 = vmatpush1.xpose.msra.mxu0 0.0
    %640 = vmatprep.subr.mxu0 0.0
    %641 = vmatpush1.xpose.msra.mxu0 0.0
    %642 = vmatprep.subr.mxu0 0.0
    %643 = vmatpush1.xpose.msra.mxu0 0.0
    %644 = vmatprep.subr.mxu0 0.0
    %645 = vmatpush1.xpose.msra.mxu0 0.0
    %646 = vmatprep.subr.mxu0 0.0
    %647 = vmatpush1.xpose.msra.mxu0 0.0
    %648 = vmatprep.subr.mxu0 0.0
    %649 = vmatpush1.xpose.msra.mxu0 0.0
    %650 = vmatprep.subr.mxu0 0.0
    %651 = vmatpush1.xpose.msra.mxu0 0.0
    %652 = vmatprep.subr.mxu0 0.0
    %653 = vmatpush1.xpose.msra.mxu0 0.0
    %654 = vmatprep.subr.mxu0 0.0
    %655 = vmatpush1.xpose.msra.mxu0 0.0
    %656 = vmatprep.mubr.f32.mxu0 0.0
    %657 = vmatmul.mubr.f32.gmra.mrb[0].mxu0 %v588
    %v658 = vpop.f32.mrb[0].mxu0
    %v659 = vadd.f32 0.0, %v658
    %v660 = vpop.f32.mrb[0].mxu0
    %661 = vdwg.mxu0
    %662 = vrot.lane.b32.xlu0 %v196, 96
    %v663 = vpop.permute.xlu0 %662
    %v664 = vsel %vm207, %v196, 0
    %v666 = vsel %vm207, %v663, 0
    %668 = vmatprep.subr.mxu0 0.0
    %669 = vmatpush1.xpose.msra.mxu0 %v666
    %670 = vmatprep.subr.mxu0 0.0
    %671 = vmatpush1.xpose.msra.mxu0 0.0
    %672 = vmatprep.subr.mxu0 0.0
    %673 = vmatpush1.xpose.msra.mxu0 0.0
    %674 = vmatprep.subr.mxu0 0.0
    %675 = vmatpush1.xpose.msra.mxu0 0.0
    %676 = vmatprep.subr.mxu0 0.0
    %677 = vmatpush1.xpose.msra.mxu0 0.0
    %678 = vmatprep.subr.mxu0 0.0
    %679 = vmatpush1.xpose.msra.mxu0 0.0
    %680 = vmatprep.subr.mxu0 0.0
    %681 = vmatpush1.xpose.msra.mxu0 0.0
    %682 = vmatprep.subr.mxu0 0.0
    %683 = vmatpush1.xpose.msra.mxu0 0.0
    %684 = vmatprep.subr.mxu0 0.0
    %685 = vmatpush1.xpose.msra.mxu0 0.0
    %686 = vmatprep.subr.mxu0 0.0
    %687 = vmatpush1.xpose.msra.mxu0 0.0
    %688 = vmatprep.subr.mxu0 0.0
    %689 = vmatpush1.xpose.msra.mxu0 0.0
    %690 = vmatprep.subr.mxu0 0.0
    %691 = vmatpush1.xpose.msra.mxu0 0.0
    %692 = vmatprep.subr.mxu0 0.0
    %693 = vmatpush1.xpose.msra.mxu0 0.0
    %694 = vmatprep.subr.mxu0 0.0
    %695 = vmatpush1.xpose.msra.mxu0 0.0
    %696 = vmatprep.subr.mxu0 0.0
    %697 = vmatpush1.xpose.msra.mxu0 0.0
    %698 = vmatprep.subr.mxu0 0.0
    %699 = vmatpush1.xpose.msra.mxu0 0.0
    %700 = vmatprep.subr.mxu0 0.0
    %701 = vmatpush1.xpose.msra.mxu0 0.0
    %702 = vmatprep.subr.mxu0 0.0
    %703 = vmatpush1.xpose.msra.mxu0 0.0
    %704 = vmatprep.subr.mxu0 0.0
    %705 = vmatpush1.xpose.msra.mxu0 0.0
    %706 = vmatprep.subr.mxu0 0.0
    %707 = vmatpush1.xpose.msra.mxu0 0.0
    %708 = vmatprep.subr.mxu0 0.0
    %709 = vmatpush1.xpose.msra.mxu0 0.0
    %710 = vmatprep.subr.mxu0 0.0
    %711 = vmatpush1.xpose.msra.mxu0 0.0
    %712 = vmatprep.subr.mxu0 0.0
    %713 = vmatpush1.xpose.msra.mxu0 0.0
    %714 = vmatprep.subr.mxu0 0.0
    %715 = vmatpush1.xpose.msra.mxu0 0.0
    %716 = vmatprep.subr.mxu0 0.0
    %717 = vmatpush1.xpose.msra.mxu0 0.0
    %718 = vmatprep.subr.mxu0 0.0
    %719 = vmatpush1.xpose.msra.mxu0 0.0
    %720 = vmatprep.subr.mxu0 0.0
    %721 = vmatpush1.xpose.msra.mxu0 0.0
    %722 = vmatprep.subr.mxu0 0.0
    %723 = vmatpush1.xpose.msra.mxu0 0.0
    %724 = vmatprep.subr.mxu0 0.0
    %725 = vmatpush1.xpose.msra.mxu0 0.0
    %726 = vmatprep.subr.mxu0 0.0
    %727 = vmatpush1.xpose.msra.mxu0 0.0
    %728 = vmatprep.subr.mxu0 0.0
    %729 = vmatpush1.xpose.msra.mxu0 0.0
    %730 = vmatprep.subr.mxu0 0.0
    %731 = vmatpush1.xpose.msra.mxu0 0.0
    %732 = vmatprep.mubr.f32.mxu0 0.0
    %733 = vmatmul.mubr.f32.gmra.mrb[0].mxu0 %v664
    %v734 = vpop.f32.mrb[0].mxu0
    %v735 = vadd.f32 0.0, %v734
    %v736 = vpop.f32.mrb[0].mxu0
    %737 = vdwg.mxu0
    %738 = vrot.lane.b32.xlu0 %v198, 96
    %v739 = vpop.permute.xlu0 %738
    %v740 = vsel %vm207, %v198, 0
    %v742 = vsel %vm207, %v739, 0
    %744 = vmatprep.subr.mxu0 0.0
    %745 = vmatpush1.xpose.msra.mxu0 %v742
    %746 = vmatprep.subr.mxu0 0.0
    %747 = vmatpush1.xpose.msra.mxu0 0.0
    %748 = vmatprep.subr.mxu0 0.0
    %749 = vmatpush1.xpose.msra.mxu0 0.0
    %750 = vmatprep.subr.mxu0 0.0
    %751 = vmatpush1.xpose.msra.mxu0 0.0
    %752 = vmatprep.subr.mxu0 0.0
    %753 = vmatpush1.xpose.msra.mxu0 0.0
    %754 = vmatprep.subr.mxu0 0.0
    %755 = vmatpush1.xpose.msra.mxu0 0.0
    %756 = vmatprep.subr.mxu0 0.0
    %757 = vmatpush1.xpose.msra.mxu0 0.0
    %758 = vmatprep.subr.mxu0 0.0
    %759 = vmatpush1.xpose.msra.mxu0 0.0
    %760 = vmatprep.subr.mxu0 0.0
    %761 = vmatpush1.xpose.msra.mxu0 0.0
    %762 = vmatprep.subr.mxu0 0.0
    %763 = vmatpush1.xpose.msra.mxu0 0.0
    %764 = vmatprep.subr.mxu0 0.0
    %765 = vmatpush1.xpose.msra.mxu0 0.0
    %766 = vmatprep.subr.mxu0 0.0
    %767 = vmatpush1.xpose.msra.mxu0 0.0
    %768 = vmatprep.subr.mxu0 0.0
    %769 = vmatpush1.xpose.msra.mxu0 0.0
    %770 = vmatprep.subr.mxu0 0.0
    %771 = vmatpush1.xpose.msra.mxu0 0.0
    %772 = vmatprep.subr.mxu0 0.0
    %773 = vmatpush1.xpose.msra.mxu0 0.0
    %774 = vmatprep.subr.mxu0 0.0
    %775 = vmatpush1.xpose.msra.mxu0 0.0
    %776 = vmatprep.subr.mxu0 0.0
    %777 = vmatpush1.xpose.msra.mxu0 0.0
    %778 = vmatprep.subr.mxu0 0.0
    %779 = vmatpush1.xpose.msra.mxu0 0.0
    %780 = vmatprep.subr.mxu0 0.0
    %781 = vmatpush1.xpose.msra.mxu0 0.0
    %782 = vmatprep.subr.mxu0 0.0
    %783 = vmatpush1.xpose.msra.mxu0 0.0
    %784 = vmatprep.subr.mxu0 0.0
    %785 = vmatpush1.xpose.msra.mxu0 0.0
    %786 = vmatprep.subr.mxu0 0.0
    %787 = vmatpush1.xpose.msra.mxu0 0.0
    %788 = vmatprep.subr.mxu0 0.0
    %789 = vmatpush1.xpose.msra.mxu0 0.0
    %790 = vmatprep.subr.mxu0 0.0
    %791 = vmatpush1.xpose.msra.mxu0 0.0
    %792 = vmatprep.subr.mxu0 0.0
    %793 = vmatpush1.xpose.msra.mxu0 0.0
    %794 = vmatprep.subr.mxu0 0.0
    %795 = vmatpush1.xpose.msra.mxu0 0.0
    %796 = vmatprep.subr.mxu0 0.0
    %797 = vmatpush1.xpose.msra.mxu0 0.0
    %798 = vmatprep.subr.mxu0 0.0
    %799 = vmatpush1.xpose.msra.mxu0 0.0
    %800 = vmatprep.subr.mxu0 0.0
    %801 = vmatpush1.xpose.msra.mxu0 0.0
    %802 = vmatprep.subr.mxu0 0.0
    %803 = vmatpush1.xpose.msra.mxu0 0.0
    %804 = vmatprep.subr.mxu0 0.0
    %805 = vmatpush1.xpose.msra.mxu0 0.0
    %806 = vmatprep.subr.mxu0 0.0
    %807 = vmatpush1.xpose.msra.mxu0 0.0
    %808 = vmatprep.mubr.f32.mxu0 0.0
    %809 = vmatmul.mubr.f32.gmra.mrb[0].mxu0 %v740
    %v810 = vpop.f32.mrb[0].mxu0
    %v811 = vadd.f32 0.0, %v810
    %v812 = vpop.f32.mrb[0].mxu0
    %813 = vdwg.mxu0
    %v814 = vmul.f32 %v279, 0.35355338
    %v815 = vmul.f32 %v355, 0.35355338
    %v816 = vmul.f32 %v431, 0.35355338
    %v817 = vmul.f32 %v507, 0.35355338
    %v818 = vmul.f32 %v583, 0.35355338
    %v819 = vmul.f32 %v659, 0.35355338
    %v820 = vmul.f32 %v735, 0.35355338
    %v821 = vmul.f32 %v811, 0.35355338
    %v822 = vadd.f32 %v814, %v204
    %v823 = vadd.f32 %v815, %v204
    %v824 = vadd.f32 %v816, %v204
    %v825 = vadd.f32 %v817, %v204
    %v826 = vadd.f32 %v818, %v204
    %v827 = vadd.f32 %v819, %v204
    %v828 = vadd.f32 %v820, %v204
    %v829 = vadd.f32 %v821, %v204
    %v830 = vsel %vm207, %v822, -inf
    %831 = vmax.xlane.f32.xlu0 %v830
    %v832 = vpop.xlane.xlu0 %831
    %v833 = vsel %vm207, %v823, -inf
    %834 = vmax.xlane.f32.xlu0 %v833
    %v835 = vpop.xlane.xlu0 %834
    %v836 = vsel %vm207, %v824, -inf
    %837 = vmax.xlane.f32.xlu0 %v836
    %v838 = vpop.xlane.xlu0 %837
    %v839 = vsel %vm207, %v825, -inf
    %840 = vmax.xlane.f32.xlu0 %v839
    %v841 = vpop.xlane.xlu0 %840
    %v842 = vsel %vm207, %v826, -inf
    %843 = vmax.xlane.f32.xlu0 %v842
    %v844 = vpop.xlane.xlu0 %843
    %v845 = vsel %vm207, %v827, -inf
    %846 = vmax.xlane.f32.xlu0 %v845
    %v847 = vpop.xlane.xlu0 %846
    %v848 = vsel %vm207, %v828, -inf
    %849 = vmax.xlane.f32.xlu0 %v848
    %v850 = vpop.xlane.xlu0 %849
    %v851 = vsel %vm207, %v829, -inf
    %852 = vmax.xlane.f32.xlu0 %v851
    %v853 = vpop.xlane.xlu0 %852
    %v854 = vsub.f32 %v822, %v832
    %v855 = vsub.f32 %v823, %v835
    %v856 = vsub.f32 %v824, %v838
    %v857 = vsub.f32 %v825, %v841
    %v858 = vsub.f32 %v826, %v844
    %v859 = vsub.f32 %v827, %v847
    %v860 = vsub.f32 %v828, %v850
    %v861 = vsub.f32 %v829, %v853
    %v862 = vmul.f32 %v854, 1.442695
    %v863 = vpow.pop %v862
    %v864 = vmul.f32 %v855, 1.442695
    %v865 = vpow.pop %v864
    %v866 = vmul.f32 %v856, 1.442695
    %v867 = vpow.pop %v866
    %v868 = vmul.f32 %v857, 1.442695
    %v869 = vpow.pop %v868
    %v870 = vmul.f32 %v858, 1.442695
    %v871 = vpow.pop %v870
    %v872 = vmul.f32 %v859, 1.442695
    %v873 = vpow.pop %v872
    %v874 = vmul.f32 %v860, 1.442695
    %v875 = vpow.pop %v874
    %v876 = vmul.f32 %v861, 1.442695
    %v877 = vpow.pop %v876
    %v878 = vsel %vm207, %v863, 0.0
    %879 = vadd.xlane.f32.xlu0 %v878
    %v880 = vpop.xlane.xlu0 %879
    %v881 = vsel %vm207, %v865, 0.0
    %882 = vadd.xlane.f32.xlu0 %v881
    %v883 = vpop.xlane.xlu0 %882
    %v884 = vsel %vm207, %v867, 0.0
    %885 = vadd.xlane.f32.xlu0 %v884
    %v886 = vpop.xlane.xlu0 %885
    %v887 = vsel %vm207, %v869, 0.0
    %888 = vadd.xlane.f32.xlu0 %v887
    %v889 = vpop.xlane.xlu0 %888
    %v890 = vsel %vm207, %v871, 0.0
    %891 = vadd.xlane.f32.xlu0 %v890
    %v892 = vpop.xlane.xlu0 %891
    %v893 = vsel %vm207, %v873, 0.0
    %894 = vadd.xlane.f32.xlu0 %v893
    %v895 = vpop.xlane.xlu0 %894
    %v896 = vsel %vm207, %v875, 0.0
    %897 = vadd.xlane.f32.xlu0 %v896
    %v898 = vpop.xlane.xlu0 %897
    %v899 = vsel %vm207, %v877, 0.0
    %900 = vadd.xlane.f32.xlu0 %v899
    %v901 = vpop.xlane.xlu0 %900
    %v902 = vrcp.pop %v880
    %v903 = vrcp.pop %v883
    %v904 = vrcp.pop %v886
    %v905 = vrcp.pop %v889
    %v906 = vrcp.pop %v892
    %v907 = vrcp.pop %v895
    %v908 = vrcp.pop %v898
    %v909 = vrcp.pop %v901
    %v910 = vmul.f32 %v863, %v902
    %v911 = vmul.f32 %v865, %v903
    %v912 = vmul.f32 %v867, %v904
    %v913 = vmul.f32 %v869, %v905
    %v914 = vmul.f32 %v871, %v906
    %v915 = vmul.f32 %v873, %v907
    %v916 = vmul.f32 %v875, %v908
    %v917 = vmul.f32 %v877, %v909
    %918 = vrot.lane.b32.xlu0 %v177, 64
    %v919 = vpop.permute.xlu0 %918
    %v922 = vsel %vm207, %v910, 0
    %924 = vmatprep.subr.mxu0 0.0
    %925 = vmatpush1.msra.mxu0 %v919
    %926 = vmatprep.subr.mxu0 0.0
    %927 = vmatpush1.msra.mxu0 0.0
    %928 = vmatprep.subr.mxu0 0.0
    %929 = vmatpush1.msra.mxu0 0.0
    %930 = vmatprep.subr.mxu0 0.0
    %931 = vmatpush1.msra.mxu0 0.0
    %932 = vmatprep.subr.mxu0 0.0
    %933 = vmatpush1.msra.mxu0 0.0
    %934 = vmatprep.subr.mxu0 0.0
    %935 = vmatpush1.msra.mxu0 0.0
    %936 = vmatprep.subr.mxu0 0.0
    %937 = vmatpush1.msra.mxu0 0.0
    %938 = vmatprep.subr.mxu0 0.0
    %939 = vmatpush1.msra.mxu0 0.0
    %940 = vmatprep.subr.mxu0 0.0
    %941 = vmatpush1.msra.mxu0 0.0
    %942 = vmatprep.subr.mxu0 0.0
    %943 = vmatpush1.msra.mxu0 0.0
    %944 = vmatprep.subr.mxu0 0.0
    %945 = vmatpush1.msra.mxu0 0.0
    %946 = vmatprep.subr.mxu0 0.0
    %947 = vmatpush1.msra.mxu0 0.0
    %948 = vmatprep.subr.mxu0 0.0
    %949 = vmatpush1.msra.mxu0 0.0
    %950 = vmatprep.subr.mxu0 0.0
    %951 = vmatpush1.msra.mxu0 0.0
    %952 = vmatprep.subr.mxu0 0.0
    %953 = vmatpush1.msra.mxu0 0.0
    %954 = vmatprep.subr.mxu0 0.0
    %955 = vmatpush1.msra.mxu0 0.0
    %956 = vmatprep.subr.mxu0 0.0
    %957 = vmatpush1.msra.mxu0 0.0
    %958 = vmatprep.subr.mxu0 0.0
    %959 = vmatpush1.msra.mxu0 0.0
    %960 = vmatprep.subr.mxu0 0.0
    %961 = vmatpush1.msra.mxu0 0.0
    %962 = vmatprep.subr.mxu0 0.0
    %963 = vmatpush1.msra.mxu0 0.0
    %964 = vmatprep.subr.mxu0 0.0
    %965 = vmatpush1.msra.mxu0 0.0
    %966 = vmatprep.subr.mxu0 0.0
    %967 = vmatpush1.msra.mxu0 0.0
    %968 = vmatprep.subr.mxu0 0.0
    %969 = vmatpush1.msra.mxu0 0.0
    %970 = vmatprep.subr.mxu0 0.0
    %971 = vmatpush1.msra.mxu0 0.0
    %972 = vmatprep.subr.mxu0 0.0
    %973 = vmatpush1.msra.mxu0 0.0
    %974 = vmatprep.subr.mxu0 0.0
    %975 = vmatpush1.msra.mxu0 0.0
    %976 = vmatprep.subr.mxu0 0.0
    %977 = vmatpush1.msra.mxu0 0.0
    %978 = vmatprep.subr.mxu0 0.0
    %979 = vmatpush1.msra.mxu0 0.0
    %980 = vmatprep.subr.mxu0 0.0
    %981 = vmatpush1.msra.mxu0 0.0
    %982 = vmatprep.subr.mxu0 0.0
    %983 = vmatpush1.msra.mxu0 0.0
    %984 = vmatprep.subr.mxu0 0.0
    %985 = vmatpush1.msra.mxu0 0.0
    %986 = vmatprep.subr.mxu0 0.0
    %987 = vmatpush1.msra.mxu0 0.0
    %988 = vmatprep.mubr.f32.mxu0 0.0
    %989 = vmatmul.mubr.f32.gmra.mrb[0].mxu0 %v922
    %v990 = vpop.f32.mrb[0].mxu0
    %v991 = vadd.f32 0.0, %v990
    %v992 = vpop.f32.mrb[0].mxu0
    %993 = vdwg.mxu0
    %994 = vrot.lane.b32.xlu0 %v182, 64
    %v995 = vpop.permute.xlu0 %994
    %v998 = vsel %vm207, %v911, 0
    %1000 = vmatprep.subr.mxu0 0.0
    %1001 = vmatpush1.msra.mxu0 %v995
    %1002 = vmatprep.subr.mxu0 0.0
    %1003 = vmatpush1.msra.mxu0 0.0
    %1004 = vmatprep.subr.mxu0 0.0
    %1005 = vmatpush1.msra.mxu0 0.0
    %1006 = vmatprep.subr.mxu0 0.0
    %1007 = vmatpush1.msra.mxu0 0.0
    %1008 = vmatprep.subr.mxu0 0.0
    %1009 = vmatpush1.msra.mxu0 0.0
    %1010 = vmatprep.subr.mxu0 0.0
    %1011 = vmatpush1.msra.mxu0 0.0
    %1012 = vmatprep.subr.mxu0 0.0
    %1013 = vmatpush1.msra.mxu0 0.0
    %1014 = vmatprep.subr.mxu0 0.0
    %1015 = vmatpush1.msra.mxu0 0.0
    %1016 = vmatprep.subr.mxu0 0.0
    %1017 = vmatpush1.msra.mxu0 0.0
    %1018 = vmatprep.subr.mxu0 0.0
    %1019 = vmatpush1.msra.mxu0 0.0
    %1020 = vmatprep.subr.mxu0 0.0
    %1021 = vmatpush1.msra.mxu0 0.0
    %1022 = vmatprep.subr.mxu0 0.0
    %1023 = vmatpush1.msra.mxu0 0.0
    %1024 = vmatprep.subr.mxu0 0.0
    %1025 = vmatpush1.msra.mxu0 0.0
    %1026 = vmatprep.subr.mxu0 0.0
    %1027 = vmatpush1.msra.mxu0 0.0
    %1028 = vmatprep.subr.mxu0 0.0
    %1029 = vmatpush1.msra.mxu0 0.0
    %1030 = vmatprep.subr.mxu0 0.0
    %1031 = vmatpush1.msra.mxu0 0.0
    %1032 = vmatprep.subr.mxu0 0.0
    %1033 = vmatpush1.msra.mxu0 0.0
    %1034 = vmatprep.subr.mxu0 0.0
    %1035 = vmatpush1.msra.mxu0 0.0
    %1036 = vmatprep.subr.mxu0 0.0
    %1037 = vmatpush1.msra.mxu0 0.0
    %1038 = vmatprep.subr.mxu0 0.0
    %1039 = vmatpush1.msra.mxu0 0.0
    %1040 = vmatprep.subr.mxu0 0.0
    %1041 = vmatpush1.msra.mxu0 0.0
    %1042 = vmatprep.subr.mxu0 0.0
    %1043 = vmatpush1.msra.mxu0 0.0
    %1044 = vmatprep.subr.mxu0 0.0
    %1045 = vmatpush1.msra.mxu0 0.0
    %1046 = vmatprep.subr.mxu0 0.0
    %1047 = vmatpush1.msra.mxu0 0.0
    %1048 = vmatprep.subr.mxu0 0.0
    %1049 = vmatpush1.msra.mxu0 0.0
    %1050 = vmatprep.subr.mxu0 0.0
    %1051 = vmatpush1.msra.mxu0 0.0
    %1052 = vmatprep.subr.mxu0 0.0
    %1053 = vmatpush1.msra.mxu0 0.0
    %1054 = vmatprep.subr.mxu0 0.0
    %1055 = vmatpush1.msra.mxu0 0.0
    %1056 = vmatprep.subr.mxu0 0.0
    %1057 = vmatpush1.msra.mxu0 0.0
    %1058 = vmatprep.subr.mxu0 0.0
    %1059 = vmatpush1.msra.mxu0 0.0
    %1060 = vmatprep.subr.mxu0 0.0
    %1061 = vmatpush1.msra.mxu0 0.0
    %1062 = vmatprep.subr.mxu0 0.0
    %1063 = vmatpush1.msra.mxu0 0.0
    %1064 = vmatprep.mubr.f32.mxu0 0.0
    %1065 = vmatmul.mubr.f32.gmra.mrb[0].mxu0 %v998
    %v1066 = vpop.f32.mrb[0].mxu0
    %v1067 = vadd.f32 0.0, %v1066
    %v1068 = vpop.f32.mrb[0].mxu0
    %1069 = vdwg.mxu0
    %1070 = vrot.lane.b32.xlu0 %v188, 64
    %v1071 = vpop.permute.xlu0 %1070
    %v1074 = vsel %vm207, %v912, 0
    %1076 = vmatprep.subr.mxu0 0.0
    %1077 = vmatpush1.msra.mxu0 %v1071
    %1078 = vmatprep.subr.mxu0 0.0
    %1079 = vmatpush1.msra.mxu0 0.0
    %1080 = vmatprep.subr.mxu0 0.0
    %1081 = vmatpush1.msra.mxu0 0.0
    %1082 = vmatprep.subr.mxu0 0.0
    %1083 = vmatpush1.msra.mxu0 0.0
    %1084 = vmatprep.subr.mxu0 0.0
    %1085 = vmatpush1.msra.mxu0 0.0
    %1086 = vmatprep.subr.mxu0 0.0
    %1087 = vmatpush1.msra.mxu0 0.0
    %1088 = vmatprep.subr.mxu0 0.0
    %1089 = vmatpush1.msra.mxu0 0.0
    %1090 = vmatprep.subr.mxu0 0.0
    %1091 = vmatpush1.msra.mxu0 0.0
    %1092 = vmatprep.subr.mxu0 0.0
    %1093 = vmatpush1.msra.mxu0 0.0
    %1094 = vmatprep.subr.mxu0 0.0
    %1095 = vmatpush1.msra.mxu0 0.0
    %1096 = vmatprep.subr.mxu0 0.0
    %1097 = vmatpush1.msra.mxu0 0.0
    %1098 = vmatprep.subr.mxu0 0.0
    %1099 = vmatpush1.msra.mxu0 0.0
    %1100 = vmatprep.subr.mxu0 0.0
    %1101 = vmatpush1.msra.mxu0 0.0
    %1102 = vmatprep.subr.mxu0 0.0
    %1103 = vmatpush1.msra.mxu0 0.0
    %1104 = vmatprep.subr.mxu0 0.0
    %1105 = vmatpush1.msra.mxu0 0.0
    %1106 = vmatprep.subr.mxu0 0.0
    %1107 = vmatpush1.msra.mxu0 0.0
    %1108 = vmatprep.subr.mxu0 0.0
    %1109 = vmatpush1.msra.mxu0 0.0
    %1110 = vmatprep.subr.mxu0 0.0
    %1111 = vmatpush1.msra.mxu0 0.0
    %1112 = vmatprep.subr.mxu0 0.0
    %1113 = vmatpush1.msra.mxu0 0.0
    %1114 = vmatprep.subr.mxu0 0.0
    %1115 = vmatpush1.msra.mxu0 0.0
    %1116 = vmatprep.subr.mxu0 0.0
    %1117 = vmatpush1.msra.mxu0 0.0
    %1118 = vmatprep.subr.mxu0 0.0
    %1119 = vmatpush1.msra.mxu0 0.0
    %1120 = vmatprep.subr.mxu0 0.0
    %1121 = vmatpush1.msra.mxu0 0.0
    %1122 = vmatprep.subr.mxu0 0.0
    %1123 = vmatpush1.msra.mxu0 0.0
    %1124 = vmatprep.subr.mxu0 0.0
    %1125 = vmatpush1.msra.mxu0 0.0
    %1126 = vmatprep.subr.mxu0 0.0
    %1127 = vmatpush1.msra.mxu0 0.0
    %1128 = vmatprep.subr.mxu0 0.0
    %1129 = vmatpush1.msra.mxu0 0.0
    %1130 = vmatprep.subr.mxu0 0.0
    %1131 = vmatpush1.msra.mxu0 0.0
    %1132 = vmatprep.subr.mxu0 0.0
    %1133 = vmatpush1.msra.mxu0 0.0
    %1134 = vmatprep.subr.mxu0 0.0
    %1135 = vmatpush1.msra.mxu0 0.0
    %1136 = vmatprep.subr.mxu0 0.0
    %1137 = vmatpush1.msra.mxu0 0.0
    %1138 = vmatprep.subr.mxu0 0.0
    %1139 = vmatpush1.msra.mxu0 0.0
    %1140 = vmatprep.mubr.f32.mxu0 0.0
    %1141 = vmatmul.mubr.f32.gmra.mrb[0].mxu0 %v1074
    %v1142 = vpop.f32.mrb[0].mxu0
    %v1143 = vadd.f32 0.0, %v1142
    %v1144 = vpop.f32.mrb[0].mxu0
    %1145 = vdwg.mxu0
    %1146 = vrot.lane.b32.xlu0 %v190, 64
    %v1147 = vpop.permute.xlu0 %1146
    %v1150 = vsel %vm207, %v913, 0
    %1152 = vmatprep.subr.mxu0 0.0
    %1153 = vmatpush1.msra.mxu0 %v1147
    %1154 = vmatprep.subr.mxu0 0.0
    %1155 = vmatpush1.msra.mxu0 0.0
    %1156 = vmatprep.subr.mxu0 0.0
    %1157 = vmatpush1.msra.mxu0 0.0
    %1158 = vmatprep.subr.mxu0 0.0
    %1159 = vmatpush1.msra.mxu0 0.0
    %1160 = vmatprep.subr.mxu0 0.0
    %1161 = vmatpush1.msra.mxu0 0.0
    %1162 = vmatprep.subr.mxu0 0.0
    %1163 = vmatpush1.msra.mxu0 0.0
    %1164 = vmatprep.subr.mxu0 0.0
    %1165 = vmatpush1.msra.mxu0 0.0
    %1166 = vmatprep.subr.mxu0 0.0
    %1167 = vmatpush1.msra.mxu0 0.0
    %1168 = vmatprep.subr.mxu0 0.0
    %1169 = vmatpush1.msra.mxu0 0.0
    %1170 = vmatprep.subr.mxu0 0.0
    %1171 = vmatpush1.msra.mxu0 0.0
    %1172 = vmatprep.subr.mxu0 0.0
    %1173 = vmatpush1.msra.mxu0 0.0
    %1174 = vmatprep.subr.mxu0 0.0
    %1175 = vmatpush1.msra.mxu0 0.0
    %1176 = vmatprep.subr.mxu0 0.0
    %1177 = vmatpush1.msra.mxu0 0.0
    %1178 = vmatprep.subr.mxu0 0.0
    %1179 = vmatpush1.msra.mxu0 0.0
    %1180 = vmatprep.subr.mxu0 0.0
    %1181 = vmatpush1.msra.mxu0 0.0
    %1182 = vmatprep.subr.mxu0 0.0
    %1183 = vmatpush1.msra.mxu0 0.0
    %1184 = vmatprep.subr.mxu0 0.0
    %1185 = vmatpush1.msra.mxu0 0.0
    %1186 = vmatprep.subr.mxu0 0.0
    %1187 = vmatpush1.msra.mxu0 0.0
    %1188 = vmatprep.subr.mxu0 0.0
    %1189 = vmatpush1.msra.mxu0 0.0
    %1190 = vmatprep.subr.mxu0 0.0
    %1191 = vmatpush1.msra.mxu0 0.0
    %1192 = vmatprep.subr.mxu0 0.0
    %1193 = vmatpush1.msra.mxu0 0.0
    %1194 = vmatprep.subr.mxu0 0.0
    %1195 = vmatpush1.msra.mxu0 0.0
    %1196 = vmatprep.subr.mxu0 0.0
    %1197 = vmatpush1.msra.mxu0 0.0
    %1198 = vmatprep.subr.mxu0 0.0
    %1199 = vmatpush1.msra.mxu0 0.0
    %1200 = vmatprep.subr.mxu0 0.0
    %1201 = vmatpush1.msra.mxu0 0.0
    %1202 = vmatprep.subr.mxu0 0.0
    %1203 = vmatpush1.msra.mxu0 0.0
    %1204 = vmatprep.subr.mxu0 0.0
    %1205 = vmatpush1.msra.mxu0 0.0
    %1206 = vmatprep.subr.mxu0 0.0
    %1207 = vmatpush1.msra.mxu0 0.0
    %1208 = vmatprep.subr.mxu0 0.0
    %1209 = vmatpush1.msra.mxu0 0.0
    %1210 = vmatprep.subr.mxu0 0.0
    %1211 = vmatpush1.msra.mxu0 0.0
    %1212 = vmatprep.subr.mxu0 0.0
    %1213 = vmatpush1.msra.mxu0 0.0
    %1214 = vmatprep.subr.mxu0 0.0
    %1215 = vmatpush1.msra.mxu0 0.0
    %1216 = vmatprep.mubr.f32.mxu0 0.0
    %1217 = vmatmul.mubr.f32.gmra.mrb[0].mxu0 %v1150
    %v1218 = vpop.f32.mrb[0].mxu0
    %v1219 = vadd.f32 0.0, %v1218
    %v1220 = vpop.f32.mrb[0].mxu0
    %1221 = vdwg.mxu0
    %1222 = vrot.lane.b32.xlu0 %v192, 64
    %v1223 = vpop.permute.xlu0 %1222
    %v1226 = vsel %vm207, %v914, 0
    %1228 = vmatprep.subr.mxu0 0.0
    %1229 = vmatpush1.msra.mxu0 %v1223
    %1230 = vmatprep.subr.mxu0 0.0
    %1231 = vmatpush1.msra.mxu0 0.0
    %1232 = vmatprep.subr.mxu0 0.0
    %1233 = vmatpush1.msra.mxu0 0.0
    %1234 = vmatprep.subr.mxu0 0.0
    %1235 = vmatpush1.msra.mxu0 0.0
    %1236 = vmatprep.subr.mxu0 0.0
    %1237 = vmatpush1.msra.mxu0 0.0
    %1238 = vmatprep.subr.mxu0 0.0
    %1239 = vmatpush1.msra.mxu0 0.0
    %1240 = vmatprep.subr.mxu0 0.0
    %1241 = vmatpush1.msra.mxu0 0.0
    %1242 = vmatprep.subr.mxu0 0.0
    %1243 = vmatpush1.msra.mxu0 0.0
    %1244 = vmatprep.subr.mxu0 0.0
    %1245 = vmatpush1.msra.mxu0 0.0
    %1246 = vmatprep.subr.mxu0 0.0
    %1247 = vmatpush1.msra.mxu0 0.0
    %1248 = vmatprep.subr.mxu0 0.0
    %1249 = vmatpush1.msra.mxu0 0.0
    %1250 = vmatprep.subr.mxu0 0.0
    %1251 = vmatpush1.msra.mxu0 0.0
    %1252 = vmatprep.subr.mxu0 0.0
    %1253 = vmatpush1.msra.mxu0 0.0
    %1254 = vmatprep.subr.mxu0 0.0
    %1255 = vmatpush1.msra.mxu0 0.0
    %1256 = vmatprep.subr.mxu0 0.0
    %1257 = vmatpush1.msra.mxu0 0.0
    %1258 = vmatprep.subr.mxu0 0.0
    %1259 = vmatpush1.msra.mxu0 0.0
    %1260 = vmatprep.subr.mxu0 0.0
    %1261 = vmatpush1.msra.mxu0 0.0
    %1262 = vmatprep.subr.mxu0 0.0
    %1263 = vmatpush1.msra.mxu0 0.0
    %1264 = vmatprep.subr.mxu0 0.0
    %1265 = vmatpush1.msra.mxu0 0.0
    %1266 = vmatprep.subr.mxu0 0.0
    %1267 = vmatpush1.msra.mxu0 0.0
    %1268 = vmatprep.subr.mxu0 0.0
    %1269 = vmatpush1.msra.mxu0 0.0
    %1270 = vmatprep.subr.mxu0 0.0
    %1271 = vmatpush1.msra.mxu0 0.0
    %1272 = vmatprep.subr.mxu0 0.0
    %1273 = vmatpush1.msra.mxu0 0.0
    %1274 = vmatprep.subr.mxu0 0.0
    %1275 = vmatpush1.msra.mxu0 0.0
    %1276 = vmatprep.subr.mxu0 0.0
    %1277 = vmatpush1.msra.mxu0 0.0
    %1278 = vmatprep.subr.mxu0 0.0
    %1279 = vmatpush1.msra.mxu0 0.0
    %1280 = vmatprep.subr.mxu0 0.0
    %1281 = vmatpush1.msra.mxu0 0.0
    %1282 = vmatprep.subr.mxu0 0.0
    %1283 = vmatpush1.msra.mxu0 0.0
    %1284 = vmatprep.subr.mxu0 0.0
    %1285 = vmatpush1.msra.mxu0 0.0
    %1286 = vmatprep.subr.mxu0 0.0
    %1287 = vmatpush1.msra.mxu0 0.0
    %1288 = vmatprep.subr.mxu0 0.0
    %1289 = vmatpush1.msra.mxu0 0.0
    %1290 = vmatprep.subr.mxu0 0.0
    %1291 = vmatpush1.msra.mxu0 0.0
    %1292 = vmatprep.mubr.f32.mxu0 0.0
    %1293 = vmatmul.mubr.f32.gmra.mrb[0].mxu0 %v1226
    %v1294 = vpop.f32.mrb[0].mxu0
    %v1295 = vadd.f32 0.0, %v1294
    %v1296 = vpop.f32.mrb[0].mxu0
    %1297 = vdwg.mxu0
    %1298 = vrot.lane.b32.xlu0 %v194, 64
    %v1299 = vpop.permute.xlu0 %1298
    %v1302 = vsel %vm207, %v915, 0
    %1304 = vmatprep.subr.mxu0 0.0
    %1305 = vmatpush1.msra.mxu0 %v1299
    %1306 = vmatprep.subr.mxu0 0.0
    %1307 = vmatpush1.msra.mxu0 0.0
    %1308 = vmatprep.subr.mxu0 0.0
    %1309 = vmatpush1.msra.mxu0 0.0
    %1310 = vmatprep.subr.mxu0 0.0
    %1311 = vmatpush1.msra.mxu0 0.0
    %1312 = vmatprep.subr.mxu0 0.0
    %1313 = vmatpush1.msra.mxu0 0.0
    %1314 = vmatprep.subr.mxu0 0.0
    %1315 = vmatpush1.msra.mxu0 0.0
    %1316 = vmatprep.subr.mxu0 0.0
    %1317 = vmatpush1.msra.mxu0 0.0
    %1318 = vmatprep.subr.mxu0 0.0
    %1319 = vmatpush1.msra.mxu0 0.0
    %1320 = vmatprep.subr.mxu0 0.0
    %1321 = vmatpush1.msra.mxu0 0.0
    %1322 = vmatprep.subr.mxu0 0.0
    %1323 = vmatpush1.msra.mxu0 0.0
    %1324 = vmatprep.subr.mxu0 0.0
    %1325 = vmatpush1.msra.mxu0 0.0
    %1326 = vmatprep.subr.mxu0 0.0
    %1327 = vmatpush1.msra.mxu0 0.0
    %1328 = vmatprep.subr.mxu0 0.0
    %1329 = vmatpush1.msra.mxu0 0.0
    %1330 = vmatprep.subr.mxu0 0.0
    %1331 = vmatpush1.msra.mxu0 0.0
    %1332 = vmatprep.subr.mxu0 0.0
    %1333 = vmatpush1.msra.mxu0 0.0
    %1334 = vmatprep.subr.mxu0 0.0
    %1335 = vmatpush1.msra.mxu0 0.0
    %1336 = vmatprep.subr.mxu0 0.0
    %1337 = vmatpush1.msra.mxu0 0.0
    %1338 = vmatprep.subr.mxu0 0.0
    %1339 = vmatpush1.msra.mxu0 0.0
    %1340 = vmatprep.subr.mxu0 0.0
    %1341 = vmatpush1.msra.mxu0 0.0
    %1342 = vmatprep.subr.mxu0 0.0
    %1343 = vmatpush1.msra.mxu0 0.0
    %1344 = vmatprep.subr.mxu0 0.0
    %1345 = vmatpush1.msra.mxu0 0.0
    %1346 = vmatprep.subr.mxu0 0.0
    %1347 = vmatpush1.msra.mxu0 0.0
    %1348 = vmatprep.subr.mxu0 0.0
    %1349 = vmatpush1.msra.mxu0 0.0
    %1350 = vmatprep.subr.mxu0 0.0
    %1351 = vmatpush1.msra.mxu0 0.0
    %1352 = vmatprep.subr.mxu0 0.0
    %1353 = vmatpush1.msra.mxu0 0.0
    %1354 = vmatprep.subr.mxu0 0.0
    %1355 = vmatpush1.msra.mxu0 0.0
    %1356 = vmatprep.subr.mxu0 0.0
    %1357 = vmatpush1.msra.mxu0 0.0
    %1358 = vmatprep.subr.mxu0 0.0
    %1359 = vmatpush1.msra.mxu0 0.0
    %1360 = vmatprep.subr.mxu0 0.0
    %1361 = vmatpush1.msra.mxu0 0.0
    %1362 = vmatprep.subr.mxu0 0.0
    %1363 = vmatpush1.msra.mxu0 0.0
    %1364 = vmatprep.subr.mxu0 0.0
    %1365 = vmatpush1.msra.mxu0 0.0
    %1366 = vmatprep.subr.mxu0 0.0
    %1367 = vmatpush1.msra.mxu0 0.0
    %1368 = vmatprep.mubr.f32.mxu0 0.0
    %1369 = vmatmul.mubr.f32.gmra.mrb[0].mxu0 %v1302
    %v1370 = vpop.f32.mrb[0].mxu0
    %v1371 = vadd.f32 0.0, %v1370
    %v1372 = vpop.f32.mrb[0].mxu0
    %1373 = vdwg.mxu0
    %1374 = vrot.lane.b32.xlu0 %v196, 64
    %v1375 = vpop.permute.xlu0 %1374
    %v1378 = vsel %vm207, %v916, 0
    %1380 = vmatprep.subr.mxu0 0.0
    %1381 = vmatpush1.msra.mxu0 %v1375
    %1382 = vmatprep.subr.mxu0 0.0
    %1383 = vmatpush1.msra.mxu0 0.0
    %1384 = vmatprep.subr.mxu0 0.0
    %1385 = vmatpush1.msra.mxu0 0.0
    %1386 = vmatprep.subr.mxu0 0.0
    %1387 = vmatpush1.msra.mxu0 0.0
    %1388 = vmatprep.subr.mxu0 0.0
    %1389 = vmatpush1.msra.mxu0 0.0
    %1390 = vmatprep.subr.mxu0 0.0
    %1391 = vmatpush1.msra.mxu0 0.0
    %1392 = vmatprep.subr.mxu0 0.0
    %1393 = vmatpush1.msra.mxu0 0.0
    %1394 = vmatprep.subr.mxu0 0.0
    %1395 = vmatpush1.msra.mxu0 0.0
    %1396 = vmatprep.subr.mxu0 0.0
    %1397 = vmatpush1.msra.mxu0 0.0
    %1398 = vmatprep.subr.mxu0 0.0
    %1399 = vmatpush1.msra.mxu0 0.0
    %1400 = vmatprep.subr.mxu0 0.0
    %1401 = vmatpush1.msra.mxu0 0.0
    %1402 = vmatprep.subr.mxu0 0.0
    %1403 = vmatpush1.msra.mxu0 0.0
    %1404 = vmatprep.subr.mxu0 0.0
    %1405 = vmatpush1.msra.mxu0 0.0
    %1406 = vmatprep.subr.mxu0 0.0
    %1407 = vmatpush1.msra.mxu0 0.0
    %1408 = vmatprep.subr.mxu0 0.0
    %1409 = vmatpush1.msra.mxu0 0.0
    %1410 = vmatprep.subr.mxu0 0.0
    %1411 = vmatpush1.msra.mxu0 0.0
    %1412 = vmatprep.subr.mxu0 0.0
    %1413 = vmatpush1.msra.mxu0 0.0
    %1414 = vmatprep.subr.mxu0 0.0
    %1415 = vmatpush1.msra.mxu0 0.0
    %1416 = vmatprep.subr.mxu0 0.0
    %1417 = vmatpush1.msra.mxu0 0.0
    %1418 = vmatprep.subr.mxu0 0.0
    %1419 = vmatpush1.msra.mxu0 0.0
    %1420 = vmatprep.subr.mxu0 0.0
    %1421 = vmatpush1.msra.mxu0 0.0
    %1422 = vmatprep.subr.mxu0 0.0
    %1423 = vmatpush1.msra.mxu0 0.0
    %1424 = vmatprep.subr.mxu0 0.0
    %1425 = vmatpush1.msra.mxu0 0.0
    %1426 = vmatprep.subr.mxu0 0.0
    %1427 = vmatpush1.msra.mxu0 0.0
    %1428 = vmatprep.subr.mxu0 0.0
    %1429 = vmatpush1.msra.mxu0 0.0
    %1430 = vmatprep.subr.mxu0 0.0
    %1431 = vmatpush1.msra.mxu0 0.0
    %1432 = vmatprep.subr.mxu0 0.0
    %1433 = vmatpush1.msra.mxu0 0.0
    %1434 = vmatprep.subr.mxu0 0.0
    %1435 = vmatpush1.msra.mxu0 0.0
    %1436 = vmatprep.subr.mxu0 0.0
    %1437 = vmatpush1.msra.mxu0 0.0
    %1438 = vmatprep.subr.mxu0 0.0
    %1439 = vmatpush1.msra.mxu0 0.0
    %1440 = vmatprep.subr.mxu0 0.0
    %1441 = vmatpush1.msra.mxu0 0.0
    %1442 = vmatprep.subr.mxu0 0.0
    %1443 = vmatpush1.msra.mxu0 0.0
    %1444 = vmatprep.mubr.f32.mxu0 0.0
    %1445 = vmatmul.mubr.f32.gmra.mrb[0].mxu0 %v1378
    %v1446 = vpop.f32.mrb[0].mxu0
    %v1447 = vadd.f32 0.0, %v1446
    %v1448 = vpop.f32.mrb[0].mxu0
    %1449 = vdwg.mxu0
    %1450 = vrot.lane.b32.xlu0 %v198, 64
    %v1451 = vpop.permute.xlu0 %1450
    %v1454 = vsel %vm207, %v917, 0
    %1456 = vmatprep.subr.mxu0 0.0
    %1457 = vmatpush1.msra.mxu0 %v1451
    %1458 = vmatprep.subr.mxu0 0.0
    %1459 = vmatpush1.msra.mxu0 0.0
    %1460 = vmatprep.subr.mxu0 0.0
    %1461 = vmatpush1.msra.mxu0 0.0
    %1462 = vmatprep.subr.mxu0 0.0
    %1463 = vmatpush1.msra.mxu0 0.0
    %1464 = vmatprep.subr.mxu0 0.0
    %1465 = vmatpush1.msra.mxu0 0.0
    %1466 = vmatprep.subr.mxu0 0.0
    %1467 = vmatpush1.msra.mxu0 0.0
    %1468 = vmatprep.subr.mxu0 0.0
    %1469 = vmatpush1.msra.mxu0 0.0
    %1470 = vmatprep.subr.mxu0 0.0
    %1471 = vmatpush1.msra.mxu0 0.0
    %1472 = vmatprep.subr.mxu0 0.0
    %1473 = vmatpush1.msra.mxu0 0.0
    %1474 = vmatprep.subr.mxu0 0.0
    %1475 = vmatpush1.msra.mxu0 0.0
    %1476 = vmatprep.subr.mxu0 0.0
    %1477 = vmatpush1.msra.mxu0 0.0
    %1478 = vmatprep.subr.mxu0 0.0
    %1479 = vmatpush1.msra.mxu0 0.0
    %1480 = vmatprep.subr.mxu0 0.0
    %1481 = vmatpush1.msra.mxu0 0.0
    %1482 = vmatprep.subr.mxu0 0.0
    %1483 = vmatpush1.msra.mxu0 0.0
    %1484 = vmatprep.subr.mxu0 0.0
    %1485 = vmatpush1.msra.mxu0 0.0
    %1486 = vmatprep.subr.mxu0 0.0
    %1487 = vmatpush1.msra.mxu0 0.0
    %1488 = vmatprep.subr.mxu0 0.0
    %1489 = vmatpush1.msra.mxu0 0.0
    %1490 = vmatprep.subr.mxu0 0.0
    %1491 = vmatpush1.msra.mxu0 0.0
    %1492 = vmatprep.subr.mxu0 0.0
    %1493 = vmatpush1.msra.mxu0 0.0
    %1494 = vmatprep.subr.mxu0 0.0
    %1495 = vmatpush1.msra.mxu0 0.0
    %1496 = vmatprep.subr.mxu0 0.0
    %1497 = vmatpush1.msra.mxu0 0.0
    %1498 = vmatprep.subr.mxu0 0.0
    %1499 = vmatpush1.msra.mxu0 0.0
    %1500 = vmatprep.subr.mxu0 0.0
    %1501 = vmatpush1.msra.mxu0 0.0
    %1502 = vmatprep.subr.mxu0 0.0
    %1503 = vmatpush1.msra.mxu0 0.0
    %1504 = vmatprep.subr.mxu0 0.0
    %1505 = vmatpush1.msra.mxu0 0.0
    %1506 = vmatprep.subr.mxu0 0.0
    %1507 = vmatpush1.msra.mxu0 0.0
    %1508 = vmatprep.subr.mxu0 0.0
    %1509 = vmatpush1.msra.mxu0 0.0
    %1510 = vmatprep.subr.mxu0 0.0
    %1511 = vmatpush1.msra.mxu0 0.0
    %1512 = vmatprep.subr.mxu0 0.0
    %1513 = vmatpush1.msra.mxu0 0.0
    %1514 = vmatprep.subr.mxu0 0.0
    %1515 = vmatpush1.msra.mxu0 0.0
    %1516 = vmatprep.subr.mxu0 0.0
    %1517 = vmatpush1.msra.mxu0 0.0
    %1518 = vmatprep.subr.mxu0 0.0
    %1519 = vmatpush1.msra.mxu0 0.0
    %1520 = vmatprep.mubr.f32.mxu0 0.0
    %1521 = vmatmul.mubr.f32.gmra.mrb[0].mxu0 %v1454
    %v1522 = vpop.f32.mrb[0].mxu0
    %v1523 = vadd.f32 0.0, %v1522
    %v1524 = vpop.f32.mrb[0].mxu0
    %1525 = vdwg.mxu0
    %1528 = vrot.lane.b32.xlu0 %v1143, 8
    %v1529 = vpop.permute.xlu0 %1528
    %1530 = vrot.lane.b32.xlu0 %v1219, 8
    %v1531 = vpop.permute.xlu0 %1530
    %1536 = vrot.lane.b32.xlu0 %v1295, 16
    %v1537 = vpop.permute.xlu0 %1536
    %1538 = vrot.lane.b32.xlu0 %v1371, 16
    %v1539 = vpop.permute.xlu0 %1538
    %1544 = vrot.lane.b32.xlu0 %v1447, 24
    %v1545 = vpop.permute.xlu0 %1544
    %1546 = vrot.lane.b32.xlu0 %v1523, 24
    %v1547 = vpop.permute.xlu0 %1546
    %v1550 = vsel %vm207, %v991, %v1529
    %v1551 = vsel %vm207, %v1067, %v1531
    %vm1552 = vcmask 130048
    %v1553 = vsel %vm1552, %v1550, %v1537
    %v1554 = vsel %vm1552, %v1551, %v1539
    %vm1555 = vcmask 195584
    %v1556 = vsel %vm1555, %v1553, %v1545
    %v1557 = vsel %vm1555, %v1554, %v1547
    %v1558 = vld [vmem:[%s5] sm:$0xff]
    %v1559 = vld [vmem:[%s5 + $0x8] sm:$0xff]
    %v1560 = vld [vmem:[%s5 + $0x10] sm:$0xff]
    %v1561 = vld [vmem:[%s5 + $0x18] sm:$0xff]
    %v1562 = vld [vmem:[%s6] sm:$0x1]
    %v1564 = vlaneseq
    %v1565 = vshrl.u32 %v1564, 7
    %v1566 = vsub.s32 0, %v1565
    %v1567 = vrot.slane %v1562, %v1566
    %v1570 = vsel %vm47, %v1556, 0
    %v1573 = vsel %vm47, %v1557, 0
    %1575 = vmatprep.subr.mxu0 0.0
    %1576 = vmatpush1.msra.mxu0 %v1558
    %1577 = vmatprep.subr.mxu0 0.0
    %1578 = vmatpush1.msra.mxu0 %v1559
    %1579 = vmatprep.subr.mxu0 0.0
    %1580 = vmatpush1.msra.mxu0 %v1560
    %1581 = vmatprep.subr.mxu0 0.0
    %1582 = vmatpush1.msra.mxu0 %v1561
    %1583 = vmatprep.subr.mxu0 0.0
    %1584 = vmatpush1.msra.mxu0 0.0
    %1585 = vmatprep.subr.mxu0 0.0
    %1586 = vmatpush1.msra.mxu0 0.0
    %1587 = vmatprep.subr.mxu0 0.0
    %1588 = vmatpush1.msra.mxu0 0.0
    %1589 = vmatprep.subr.mxu0 0.0
    %1590 = vmatpush1.msra.mxu0 0.0
    %1591 = vmatprep.subr.mxu0 0.0
    %1592 = vmatpush1.msra.mxu0 0.0
    %1593 = vmatprep.subr.mxu0 0.0
    %1594 = vmatpush1.msra.mxu0 0.0
    %1595 = vmatprep.subr.mxu0 0.0
    %1596 = vmatpush1.msra.mxu0 0.0
    %1597 = vmatprep.subr.mxu0 0.0
    %1598 = vmatpush1.msra.mxu0 0.0
    %1599 = vmatprep.subr.mxu0 0.0
    %1600 = vmatpush1.msra.mxu0 0.0
    %1601 = vmatprep.subr.mxu0 0.0
    %1602 = vmatpush1.msra.mxu0 0.0
    %1603 = vmatprep.subr.mxu0 0.0
    %1604 = vmatpush1.msra.mxu0 0.0
    %1605 = vmatprep.subr.mxu0 0.0
    %1606 = vmatpush1.msra.mxu0 0.0
    %1607 = vmatprep.subr.mxu0 0.0
    %1608 = vmatpush1.msra.mxu0 0.0
    %1609 = vmatprep.subr.mxu0 0.0
    %1610 = vmatpush1.msra.mxu0 0.0
    %1611 = vmatprep.subr.mxu0 0.0
    %1612 = vmatpush1.msra.mxu0 0.0
    %1613 = vmatprep.subr.mxu0 0.0
    %1614 = vmatpush1.msra.mxu0 0.0
    %1615 = vmatprep.subr.mxu0 0.0
    %1616 = vmatpush1.msra.mxu0 0.0
    %1617 = vmatprep.subr.mxu0 0.0
    %1618 = vmatpush1.msra.mxu0 0.0
    %1619 = vmatprep.subr.mxu0 0.0
    %1620 = vmatpush1.msra.mxu0 0.0
    %1621 = vmatprep.subr.mxu0 0.0
    %1622 = vmatpush1.msra.mxu0 0.0
    %1623 = vmatprep.subr.mxu0 0.0
    %1624 = vmatpush1.msra.mxu0 0.0
    %1625 = vmatprep.subr.mxu0 0.0
    %1626 = vmatpush1.msra.mxu0 0.0
    %1627 = vmatprep.subr.mxu0 0.0
    %1628 = vmatpush1.msra.mxu0 0.0
    %1629 = vmatprep.subr.mxu0 0.0
    %1630 = vmatpush1.msra.mxu0 0.0
    %1631 = vmatprep.subr.mxu0 0.0
    %1632 = vmatpush1.msra.mxu0 0.0
    %1633 = vmatprep.subr.mxu0 0.0
    %1634 = vmatpush1.msra.mxu0 0.0
    %1635 = vmatprep.subr.mxu0 0.0
    %1636 = vmatpush1.msra.mxu0 0.0
    %1637 = vmatprep.subr.mxu0 0.0
    %1638 = vmatpush1.msra.mxu0 0.0
    %1639 = vmatprep.mubr.f32.mxu0 0.0
    %1640 = vmatmul.mubr.f32.gmra.mrb[0].mxu0 %v1570
    %v1641 = vpop.f32.mrb[0].mxu0
    %v1642 = vadd.f32 %v1567, %v1641
    %v1643 = vpop.f32.mrb[0].mxu0
    %1644 = vmatprep.mubr.f32.mxu0 0.0
    %1645 = vmatmul.mubr.f32.gmra.mrb[0].mxu0 %v1573
    %v1646 = vpop.f32.mrb[0].mxu0
    %v1647 = vadd.f32 %v1567, %v1646
    %v1648 = vpop.f32.mrb[0].mxu0
    %1649 = vdwg.mxu0
    %v1650 = vadd.f32 %v45, %v1642
    %v1651 = vadd.f32 %v46, %v1647
    %v1652 = vsel %vm47, %v1650, 0.0
    %1653 = vadd.xlane.f32.xlu0 %v1652
    %v1654 = vpop.xlane.xlu0 %1653
    %v1655 = vsel %vm47, %v1651, 0.0
    %1656 = vadd.xlane.f32.xlu0 %v1655
    %v1657 = vpop.xlane.xlu0 %1656
    %v1658 = vmul.f32 %v1654, %v54
    %v1659 = vmul.f32 %v1657, %v54
    %v1660 = vsub.f32 %v1650, %v1658
    %v1661 = vsub.f32 %v1651, %v1659
    %v1662 = vmul.f32 %v1660, %v1660
    %v1663 = vmul.f32 %v1661, %v1661
    %v1664 = vsel %vm47, %v1662, 0.0
    %1665 = vadd.xlane.f32.xlu0 %v1664
    %v1666 = vpop.xlane.xlu0 %1665
    %v1667 = vsel %vm47, %v1663, 0.0
    %1668 = vadd.xlane.f32.xlu0 %v1667
    %v1669 = vpop.xlane.xlu0 %1668
    %v1670 = vmul.f32 %v1666, %v54
    %v1671 = vmul.f32 %v1669, %v54
    %v1672 = vadd.f32 %v1670, 1e-05
    %v1673 = vadd.f32 %v1671, 1e-05
    %v1674 = vrsqrt.pop %v1672
    %v1675 = vrsqrt.pop %v1673
    %v1676 = vmul.f32 %v1660, %v1674
    %v1677 = vmul.f32 %v1661, %v1675
    %v1678 = vld [vmem:[%s7] sm:$0x1]
    %v1680 = vlaneseq
    %v1681 = vshrl.u32 %v1680, 7
    %v1682 = vsub.s32 0, %v1681
    %v1683 = vrot.slane %v1678, %v1682
    %v1685 = vmul.f32 %v1676, %v1683
    %v1686 = vmul.f32 %v1677, %v1683
    %v1687 = vld [vmem:[%s8] sm:$0x1]
    %v1689 = vlaneseq
    %v1690 = vshrl.u32 %v1689, 7
    %v1691 = vsub.s32 0, %v1690
    %v1692 = vrot.slane %v1687, %v1691
    %v1694 = vadd.f32 %v1685, %v1692
    %v1695 = vadd.f32 %v1686, %v1692
    %v1696 = vld [vmem:[%s9] sm:$0xff]
    %v1697 = vld [vmem:[%s9 + $0x8] sm:$0xff]
    %v1698 = vld [vmem:[%s9 + $0x10] sm:$0xff]
    %v1699 = vld [vmem:[%s9 + $0x18] sm:$0xff]
    %v1700 = vld [vmem:[%s10] sm:$0x1]
    %v1702 = vlaneseq
    %v1703 = vshrl.u32 %v1702, 7
    %v1704 = vsub.s32 0, %v1703
    %v1705 = vrot.slane %v1700, %v1704
    %v1708 = vsel %vm47, %v1694, 0
    %v1711 = vsel %vm47, %v1695, 0
    %1713 = vmatprep.subr.mxu0 0.0
    %1714 = vmatpush1.msra.mxu0 %v1696
    %1715 = vmatprep.subr.mxu0 0.0
    %1716 = vmatpush1.msra.mxu0 %v1697
    %1717 = vmatprep.subr.mxu0 0.0
    %1718 = vmatpush1.msra.mxu0 %v1698
    %1719 = vmatprep.subr.mxu0 0.0
    %1720 = vmatpush1.msra.mxu0 %v1699
    %1721 = vmatprep.subr.mxu0 0.0
    %1722 = vmatpush1.msra.mxu0 0.0
    %1723 = vmatprep.subr.mxu0 0.0
    %1724 = vmatpush1.msra.mxu0 0.0
    %1725 = vmatprep.subr.mxu0 0.0
    %1726 = vmatpush1.msra.mxu0 0.0
    %1727 = vmatprep.subr.mxu0 0.0
    %1728 = vmatpush1.msra.mxu0 0.0
    %1729 = vmatprep.subr.mxu0 0.0
    %1730 = vmatpush1.msra.mxu0 0.0
    %1731 = vmatprep.subr.mxu0 0.0
    %1732 = vmatpush1.msra.mxu0 0.0
    %1733 = vmatprep.subr.mxu0 0.0
    %1734 = vmatpush1.msra.mxu0 0.0
    %1735 = vmatprep.subr.mxu0 0.0
    %1736 = vmatpush1.msra.mxu0 0.0
    %1737 = vmatprep.subr.mxu0 0.0
    %1738 = vmatpush1.msra.mxu0 0.0
    %1739 = vmatprep.subr.mxu0 0.0
    %1740 = vmatpush1.msra.mxu0 0.0
    %1741 = vmatprep.subr.mxu0 0.0
    %1742 = vmatpush1.msra.mxu0 0.0
    %1743 = vmatprep.subr.mxu0 0.0
    %1744 = vmatpush1.msra.mxu0 0.0
    %1745 = vmatprep.subr.mxu0 0.0
    %1746 = vmatpush1.msra.mxu0 0.0
    %1747 = vmatprep.subr.mxu0 0.0
    %1748 = vmatpush1.msra.mxu0 0.0
    %1749 = vmatprep.subr.mxu0 0.0
    %1750 = vmatpush1.msra.mxu0 0.0
    %1751 = vmatprep.subr.mxu0 0.0
    %1752 = vmatpush1.msra.mxu0 0.0
    %1753 = vmatprep.subr.mxu0 0.0
    %1754 = vmatpush1.msra.mxu0 0.0
    %1755 = vmatprep.subr.mxu0 0.0
    %1756 = vmatpush1.msra.mxu0 0.0
    %1757 = vmatprep.subr.mxu0 0.0
    %1758 = vmatpush1.msra.mxu0 0.0
    %1759 = vmatprep.subr.mxu0 0.0
    %1760 = vmatpush1.msra.mxu0 0.0
    %1761 = vmatprep.subr.mxu0 0.0
    %1762 = vmatpush1.msra.mxu0 0.0
    %1763 = vmatprep.subr.mxu0 0.0
    %1764 = vmatpush1.msra.mxu0 0.0
    %1765 = vmatprep.subr.mxu0 0.0
    %1766 = vmatpush1.msra.mxu0 0.0
    %1767 = vmatprep.subr.mxu0 0.0
    %1768 = vmatpush1.msra.mxu0 0.0
    %1769 = vmatprep.subr.mxu0 0.0
    %1770 = vmatpush1.msra.mxu0 0.0
    %1771 = vmatprep.subr.mxu0 0.0
    %1772 = vmatpush1.msra.mxu0 0.0
    %1773 = vmatprep.subr.mxu0 0.0
    %1774 = vmatpush1.msra.mxu0 0.0
    %1775 = vmatprep.subr.mxu0 0.0
    %1776 = vmatpush1.msra.mxu0 0.0
    %1777 = vmatprep.mubr.f32.mxu0 0.0
    %1778 = vmatmul.mubr.f32.gmra.mrb[0].mxu0 %v1708
    %v1779 = vpop.f32.mrb[0].mxu0
    %v1780 = vadd.f32 %v1705, %v1779
    %v1781 = vpop.f32.mrb[0].mxu0
    %1782 = vmatprep.mubr.f32.mxu0 0.0
    %1783 = vmatmul.mubr.f32.gmra.mrb[0].mxu0 %v1711
    %v1784 = vpop.f32.mrb[0].mxu0
    %v1785 = vadd.f32 %v1705, %v1784
    %v1786 = vpop.f32.mrb[0].mxu0
    %1787 = vdwg.mxu0
    %v1788 = vmul.f32 %v1780, %v1780
    %v1789 = vmul.f32 %v1785, %v1785
    %v1790 = vmul.f32 %v1780, %v1788
    %v1791 = vmul.f32 %v1785, %v1789
    %v1792 = vmul.f32 %v1790, 0.044715
    %v1793 = vmul.f32 %v1791, 0.044715
    %v1794 = vadd.f32 %v1780, %v1792
    %v1795 = vadd.f32 %v1785, %v1793
    %v1796 = vmul.f32 %v1794, 0.7978846
    %v1797 = vmul.f32 %v1795, 0.7978846
    %v1798 = vtanh.pop %v1796
    %v1799 = vtanh.pop %v1797
    %v1800 = vadd.f32 %v1798, 1.0
    %v1801 = vadd.f32 %v1799, 1.0
    %v1802 = vmul.f32 %v1800, 0.5
    %v1803 = vmul.f32 %v1801, 0.5
    %v1804 = vmul.f32 %v1780, %v1802
    %v1805 = vmul.f32 %v1785, %v1803
    %v1806 = vld [vmem:[%s11] sm:$0xff]
    %v1807 = vld [vmem:[%s11 + $0x8] sm:$0xff]
    %v1808 = vld [vmem:[%s11 + $0x10] sm:$0xff]
    %v1809 = vld [vmem:[%s11 + $0x18] sm:$0xff]
    %v1810 = vld [vmem:[%s11 + $0x20] sm:$0xff]
    %v1811 = vld [vmem:[%s11 + $0x28] sm:$0xff]
    %v1812 = vld [vmem:[%s11 + $0x30] sm:$0xff]
    %v1813 = vld [vmem:[%s11 + $0x38] sm:$0xff]
    %v1814 = vld [vmem:[%s11 + $0x40] sm:$0xff]
    %v1815 = vld [vmem:[%s11 + $0x48] sm:$0xff]
    %v1816 = vld [vmem:[%s11 + $0x50] sm:$0xff]
    %v1817 = vld [vmem:[%s11 + $0x58] sm:$0xff]
    %v1818 = vld [vmem:[%s11 + $0x60] sm:$0xff]
    %v1819 = vld [vmem:[%s11 + $0x68] sm:$0xff]
    %v1820 = vld [vmem:[%s11 + $0x70] sm:$0xff]
    %v1821 = vld [vmem:[%s11 + $0x78] sm:$0xff]
    %v1822 = vld [vmem:[%s12] sm:$0x1]
    %v1824 = vlaneseq
    %v1825 = vshrl.u32 %v1824, 7
    %v1826 = vsub.s32 0, %v1825
    %v1827 = vrot.slane %v1822, %v1826
    %1829 = vmatprep.subr.mxu0 0.0
    %1830 = vmatpush1.msra.mxu0 %v1806
    %1831 = vmatprep.subr.mxu0 0.0
    %1832 = vmatpush1.msra.mxu0 %v1807
    %1833 = vmatprep.subr.mxu0 0.0
    %1834 = vmatpush1.msra.mxu0 %v1808
    %1835 = vmatprep.subr.mxu0 0.0
    %1836 = vmatpush1.msra.mxu0 %v1809
    %1837 = vmatprep.subr.mxu0 0.0
    %1838 = vmatpush1.msra.mxu0 %v1810
    %1839 = vmatprep.subr.mxu0 0.0
    %1840 = vmatpush1.msra.mxu0 %v1811
    %1841 = vmatprep.subr.mxu0 0.0
    %1842 = vmatpush1.msra.mxu0 %v1812
    %1843 = vmatprep.subr.mxu0 0.0
    %1844 = vmatpush1.msra.mxu0 %v1813
    %1845 = vmatprep.subr.mxu0 0.0
    %1846 = vmatpush1.msra.mxu0 %v1814
    %1847 = vmatprep.subr.mxu0 0.0
    %1848 = vmatpush1.msra.mxu0 %v1815
    %1849 = vmatprep.subr.mxu0 0.0
    %1850 = vmatpush1.msra.mxu0 %v1816
    %1851 = vmatprep.subr.mxu0 0.0
    %1852 = vmatpush1.msra.mxu0 %v1817
    %1853 = vmatprep.subr.mxu0 0.0
    %1854 = vmatpush1.msra.mxu0 %v1818
    %1855 = vmatprep.subr.mxu0 0.0
    %1856 = vmatpush1.msra.mxu0 %v1819
    %1857 = vmatprep.subr.mxu0 0.0
    %1858 = vmatpush1.msra.mxu0 %v1820
    %1859 = vmatprep.subr.mxu0 0.0
    %1860 = vmatpush1.msra.mxu0 %v1821
    %1861 = vmatprep.subr.mxu0 0.0
    %1862 = vmatpush1.msra.mxu0 0.0
    %1863 = vmatprep.subr.mxu0 0.0
    %1864 = vmatpush1.msra.mxu0 0.0
    %1865 = vmatprep.subr.mxu0 0.0
    %1866 = vmatpush1.msra.mxu0 0.0
    %1867 = vmatprep.subr.mxu0 0.0
    %1868 = vmatpush1.msra.mxu0 0.0
    %1869 = vmatprep.subr.mxu0 0.0
    %1870 = vmatpush1.msra.mxu0 0.0
    %1871 = vmatprep.subr.mxu0 0.0
    %1872 = vmatpush1.msra.mxu0 0.0
    %1873 = vmatprep.subr.mxu0 0.0
    %1874 = vmatpush1.msra.mxu0 0.0
    %1875 = vmatprep.subr.mxu0 0.0
    %1876 = vmatpush1.msra.mxu0 0.0
    %1877 = vmatprep.subr.mxu0 0.0
    %1878 = vmatpush1.msra.mxu0 0.0
    %1879 = vmatprep.subr.mxu0 0.0
    %1880 = vmatpush1.msra.mxu0 0.0
    %1881 = vmatprep.subr.mxu0 0.0
    %1882 = vmatpush1.msra.mxu0 0.0
    %1883 = vmatprep.subr.mxu0 0.0
    %1884 = vmatpush1.msra.mxu0 0.0
    %1885 = vmatprep.subr.mxu0 0.0
    %1886 = vmatpush1.msra.mxu0 0.0
    %1887 = vmatprep.subr.mxu0 0.0
    %1888 = vmatpush1.msra.mxu0 0.0
    %1889 = vmatprep.subr.mxu0 0.0
    %1890 = vmatpush1.msra.mxu0 0.0
    %1891 = vmatprep.subr.mxu0 0.0
    %1892 = vmatpush1.msra.mxu0 0.0
    %1893 = vmatprep.mubr.f32.mxu0 0.0
    %1894 = vmatmul.mubr.f32.gmra.mrb[0].mxu0 %v1804
    %v1895 = vpop.f32.mrb[0].mxu0
    %v1896 = vadd.f32 %v1827, %v1895
    %v1897 = vpop.f32.mrb[0].mxu0
    %1898 = vmatprep.mubr.f32.mxu0 0.0
    %1899 = vmatmul.mubr.f32.gmra.mrb[0].mxu0 %v1805
    %v1900 = vpop.f32.mrb[0].mxu0
    %v1901 = vadd.f32 %v1827, %v1900
    %v1902 = vpop.f32.mrb[0].mxu0
    %1903 = vdwg.mxu0
    %v1904 = vadd.f32 %v1650, %v1896
    %v1905 = vadd.f32 %v1651, %v1901
    %1906 = vst.msk [vmem:[#allocation2] sm:$0xff] %vm47, %v1904
    %1907 = vst.msk [vmem:[#allocation2 + $0x8] sm:$0xff] %vm47, %v1905
    // Predicated region
    $region54: #{tpu_custom_call.1} parent=1 // pred_check
      _
    $region55: #{tpu_custom_call.1} parent=1 // pred_check_branch
      %1909 = sbr.rel (0) target = $region57
    $region56: #{tpu_custom_call.1} parent=1 // pred_region
      %s1911 = ssub.s32 256, 256
      %1912 = vsyncadd [#allocation3], %s1911
      %s1913 = sshll.u32 [#allocation2], 4
      %s1914 = int_to_ptr.vmem [resolvable:$true] %s1913
      %1919 = dma.vmem_to_hbm [thread:$0]  %s1914, 256, %s13, [#allocation3], 128, 128, 8
    $region57: #{tpu_custom_call.1} parent=1 // pred_fallthru
      _
    // Predicated region
    $region58: #{tpu_custom_call.1} parent=1 // pred_check
      _
    $region59: #{tpu_custom_call.1} parent=1 // pred_check_branch
      %1921 = sbr.rel (0) target = $region61
    $region60: #{tpu_custom_call.1} parent=1 // pred_region
      %1922 = dma.done [#allocation3], 256
    $region61: #{tpu_custom_call.1} parent=1 // pred_fallthru
      _
    %1923 = vsyncpa [#allocation3], 1

</llo_original>
